<compile_context>
chip_gen: v7x
topology: tpu7x:2x2x1
jax: 0.10.0
libtpu: 0.0.40
codegen_flags: <defaults>
</compile_context>

<pallas_src>
import jax
import jax.numpy as jnp
from jax.experimental import pallas as pl
from jax.experimental.pallas import tpu as pltpu

# ---------------- model hyper-parameters -----------------------------------
BATCH = 256                                    # multiple of 8; amortizes launch cost
LATENT_DIM = 16
NUM_CLASSES = 4
IN_DIM = LATENT_DIM + NUM_CLASSES + 1          # latent_dim + num_classes + 1
G_HID = (32, 64, 64, 32)                       # args.g_hid
OUT_DIM = 24                                   # args.output_dim
BN_EPS = 1e-5
LRELU_SLOPE = 0.3
AFF_LANES = 128                                # lane-padded width of packed vec table
# packed affine table layout: row 2*i = gamma_i, row 2*i+1 = beta_i (i=0..3), row 8 = b5
B5_ROW = 8
AFF_ROWS = 9


def _linear_bn_lrelu(h, w, gamma, beta):
    """Linear (bias omitted: cancels under training-mode BN) -> BN -> LeakyReLU(0.3)."""
    z = jnp.dot(h, w, preferred_element_type=jnp.float32)
    mean = jnp.mean(z, axis=0, keepdims=True)
    mean_sq = jnp.mean(z * z, axis=0, keepdims=True)
    var = mean_sq - mean * mean                      # biased variance, one pass
    scale = gamma * jax.lax.rsqrt(var + BN_EPS)      # fold BN affine into one FMA
    shift = beta - mean * scale
    zn = z * scale + shift
    return jnp.where(zn > 0, zn, LRELU_SLOPE * zn)


def generator_kernel(v_ref, w1_ref, w2_ref, w3_ref, w4_ref, w5_ref, aff_ref,
                     out_ref):
    aff = aff_ref[...]                               # (9, 128) packed gamma/beta/b5
    h = v_ref[...]
    for i, (w_ref, dout) in enumerate(
            zip((w1_ref, w2_ref, w3_ref, w4_ref), G_HID)):
        gamma = aff[2 * i:2 * i + 1, :dout]          # (1, dout)
        beta = aff[2 * i + 1:2 * i + 2, :dout]       # (1, dout)
        h = _linear_bn_lrelu(h, w_ref[...], gamma, beta)
    b5 = aff[B5_ROW:B5_ROW + 1, :OUT_DIM]
    y = jnp.dot(h, w5_ref[...], preferred_element_type=jnp.float32) + b5
    out_ref[...] = jnp.tanh(y)


def init_params(key):
    """Weights ~ N(0, 0.02) (init_normal style); BN gamma=1, beta=0; b5=0.
    Linear biases b1..b4 are omitted (mathematically dead under training-mode BN)."""
    dims = (IN_DIM,) + G_HID + (OUT_DIM,)
    weights = []
    for i in range(5):
        key, wk = jax.random.split(key)
        w = (0.02 * jax.random.normal(wk, (dims[i], dims[i + 1]))).astype(jnp.float32)
        weights.append(w)
    aff = jnp.zeros((AFF_ROWS, AFF_LANES), jnp.float32)
    for i, dout in enumerate(G_HID):
        aff = aff.at[2 * i, :dout].set(1.0)          # gamma_i = 1
        # beta_i (row 2*i+1) and b5 (row 8) stay zero
    return weights, aff


def generator_forward(x, c, r, weights, aff):
    # glue: flatten + concat (matches x.view(B,-1) / c.view(B,-1) / r.view(B,-1))
    B = x.shape[0]
    v = jnp.concatenate(
        [x.reshape(B, -1).astype(jnp.float32),
         c.reshape(B, -1).astype(jnp.float32),
         r.reshape(B, -1).astype(jnp.float32)], axis=1)

    vmem = pl.BlockSpec(memory_space=pltpu.MemorySpace.VMEM)
    return pl.pallas_call(
        generator_kernel,
        out_shape=jax.ShapeDtypeStruct((B, OUT_DIM), jnp.float32),
        in_specs=[vmem] * 7,                          # v, w1..w5, affine table
        out_specs=vmem,
    )(v, *weights, aff)


def reference_forward(x, c, r, weights, aff):
    """Pure-JAX reference (canonical PyTorch BN training-mode formulation)."""
    B = x.shape[0]
    h = jnp.concatenate(
        [x.reshape(B, -1).astype(jnp.float32),
         c.reshape(B, -1).astype(jnp.float32),
         r.reshape(B, -1).astype(jnp.float32)], axis=1)
    for i, dout in enumerate(G_HID):
        z = h @ weights[i]
        mean = z.mean(0, keepdims=True)
        var = ((z - mean) ** 2).mean(0, keepdims=True)
        gamma = aff[2 * i:2 * i + 1, :dout]
        beta = aff[2 * i + 1:2 * i + 2, :dout]
        zn = (z - mean) / jnp.sqrt(var + BN_EPS) * gamma + beta
        h = jnp.where(zn > 0, zn, LRELU_SLOPE * zn)
    b5 = aff[B5_ROW:B5_ROW + 1, :OUT_DIM]
    return jnp.tanh(h @ weights[4] + b5)


if __name__ == "__main__":
    key = jax.random.PRNGKey(0)
    kp, kx, kc, kr = jax.random.split(key, 4)

    weights, aff = init_params(kp)

    x = jax.random.normal(kx, (BATCH, LATENT_DIM), dtype=jnp.float32)
    # one-hot class conditioning and a scalar regression code, like the cGAN setup
    c = jax.nn.one_hot(jax.random.randint(kc, (BATCH,), 0, NUM_CLASSES), NUM_CLASSES,
                       dtype=jnp.float32)
    r = jax.random.uniform(kr, (BATCH, 1), dtype=jnp.float32)

    y = generator_forward(x, c, r, weights, aff)
    y = jax.block_until_ready(y)

    y_ref = reference_forward(x, c, r, weights, aff)
    assert y.shape == (BATCH, OUT_DIM)
    assert jnp.allclose(y, y_ref, atol=5e-5, rtol=5e-5), \
        float(jnp.max(jnp.abs(y - y_ref)))

    print("KERNEL_OK")
</pallas_src>

<mosaic_0001>
module attributes {stable_mosaic.version = 11 : i64} {
  func.func @generator_kernel(%arg0: memref<256x21xf32, #tpu.memory_space<vmem>>, %arg1: memref<21x32xf32, #tpu.memory_space<vmem>>, %arg2: memref<32x64xf32, #tpu.memory_space<vmem>>, %arg3: memref<64x64xf32, #tpu.memory_space<vmem>>, %arg4: memref<64x32xf32, #tpu.memory_space<vmem>>, %arg5: memref<32x24xf32, #tpu.memory_space<vmem>>, %arg6: memref<9x128xf32, #tpu.memory_space<vmem>>, %arg7: memref<256x24xf32, #tpu.memory_space<vmem>>) attributes {dimension_semantics = [], scalar_prefetch = 0 : i64, scratch_operands = 0 : i64, tpu.core_type = #tpu.core_type<tc>} {
    %c0 = arith.constant 0 : index
    %c0_0 = arith.constant 0 : index
    %0 = vector.load %arg6[%c0, %c0_0] : memref<9x128xf32, #tpu.memory_space<vmem>>, vector<9x128xf32>
    %c0_1 = arith.constant 0 : index
    %c0_2 = arith.constant 0 : index
    %1 = vector.load %arg0[%c0_1, %c0_2] : memref<256x21xf32, #tpu.memory_space<vmem>>, vector<256x21xf32>
    %2 = vector.extract_strided_slice %0 {offsets = [0, 0], sizes = [1, 32], strides = [1, 1]} : vector<9x128xf32> to vector<1x32xf32>
    %3 = vector.extract_strided_slice %0 {offsets = [1, 0], sizes = [1, 32], strides = [1, 1]} : vector<9x128xf32> to vector<1x32xf32>
    %c0_3 = arith.constant 0 : index
    %c0_4 = arith.constant 0 : index
    %4 = vector.load %arg1[%c0_3, %c0_4] : memref<21x32xf32, #tpu.memory_space<vmem>>, vector<21x32xf32>
    %cst = arith.constant dense<0.000000e+00> : vector<256x32xf32>
    %5 = tpu.matmul %1, %4, %cst {dimension_numbers = #tpu.dot_dimension_numbers<[1], [0], [0], [1], [0, 0, 1, 1], [], []>} : vector<256x21xf32>, vector<21x32xf32>, vector<256x32xf32> -> vector<256x32xf32>
    %cst_5 = arith.constant dense<0.000000e+00> : vector<32xf32>
    %6 = vector.multi_reduction <add>, %5, %cst_5 [0] : vector<256x32xf32> to vector<32xf32>
    %7 = vector.shape_cast %6 : vector<32xf32> to vector<1x32xf32>
    %cst_6 = arith.constant 2.560000e+02 : f32
    %8 = vector.broadcast %cst_6 : f32 to vector<1x32xf32>
    %9 = arith.divf %7, %8 : vector<1x32xf32>
    %10 = arith.mulf %5, %5 : vector<256x32xf32>
    %cst_7 = arith.constant dense<0.000000e+00> : vector<32xf32>
    %11 = vector.multi_reduction <add>, %10, %cst_7 [0] : vector<256x32xf32> to vector<32xf32>
    %12 = vector.shape_cast %11 : vector<32xf32> to vector<1x32xf32>
    %cst_8 = arith.constant 2.560000e+02 : f32
    %13 = vector.broadcast %cst_8 : f32 to vector<1x32xf32>
    %14 = arith.divf %12, %13 : vector<1x32xf32>
    %15 = arith.mulf %9, %9 : vector<1x32xf32>
    %16 = arith.subf %14, %15 : vector<1x32xf32>
    %cst_9 = arith.constant 9.99999974E-6 : f32
    %17 = vector.broadcast %cst_9 : f32 to vector<1x32xf32>
    %18 = arith.addf %16, %17 : vector<1x32xf32>
    %19 = math.rsqrt %18 : vector<1x32xf32>
    %20 = arith.mulf %2, %19 : vector<1x32xf32>
    %21 = arith.mulf %9, %20 : vector<1x32xf32>
    %22 = arith.subf %3, %21 : vector<1x32xf32>
    %23 = vector.broadcast %20 : vector<1x32xf32> to vector<256x32xf32>
    %24 = arith.mulf %5, %23 : vector<256x32xf32>
    %25 = vector.broadcast %22 : vector<1x32xf32> to vector<256x32xf32>
    %26 = arith.addf %24, %25 : vector<256x32xf32>
    %cst_10 = arith.constant 0.000000e+00 : f32
    %27 = vector.broadcast %cst_10 : f32 to vector<256x32xf32>
    %28 = arith.cmpf ogt, %26, %27 : vector<256x32xf32>
    %cst_11 = arith.constant 3.000000e-01 : f32
    %29 = vector.broadcast %cst_11 : f32 to vector<256x32xf32>
    %30 = arith.mulf %29, %26 : vector<256x32xf32>
    %31 = arith.select %28, %26, %30 : vector<256x32xi1>, vector<256x32xf32>
    %32 = vector.extract_strided_slice %0 {offsets = [2, 0], sizes = [1, 64], strides = [1, 1]} : vector<9x128xf32> to vector<1x64xf32>
    %33 = vector.extract_strided_slice %0 {offsets = [3, 0], sizes = [1, 64], strides = [1, 1]} : vector<9x128xf32> to vector<1x64xf32>
    %c0_12 = arith.constant 0 : index
    %c0_13 = arith.constant 0 : index
    %34 = vector.load %arg2[%c0_12, %c0_13] : memref<32x64xf32, #tpu.memory_space<vmem>>, vector<32x64xf32>
    %cst_14 = arith.constant dense<0.000000e+00> : vector<256x64xf32>
    %35 = tpu.matmul %31, %34, %cst_14 {dimension_numbers = #tpu.dot_dimension_numbers<[1], [0], [0], [1], [0, 0, 1, 1], [], []>} : vector<256x32xf32>, vector<32x64xf32>, vector<256x64xf32> -> vector<256x64xf32>
    %cst_15 = arith.constant dense<0.000000e+00> : vector<64xf32>
    %36 = vector.multi_reduction <add>, %35, %cst_15 [0] : vector<256x64xf32> to vector<64xf32>
    %37 = vector.shape_cast %36 : vector<64xf32> to vector<1x64xf32>
    %cst_16 = arith.constant 2.560000e+02 : f32
    %38 = vector.broadcast %cst_16 : f32 to vector<1x64xf32>
    %39 = arith.divf %37, %38 : vector<1x64xf32>
    %40 = arith.mulf %35, %35 : vector<256x64xf32>
    %cst_17 = arith.constant dense<0.000000e+00> : vector<64xf32>
    %41 = vector.multi_reduction <add>, %40, %cst_17 [0] : vector<256x64xf32> to vector<64xf32>
    %42 = vector.shape_cast %41 : vector<64xf32> to vector<1x64xf32>
    %cst_18 = arith.constant 2.560000e+02 : f32
    %43 = vector.broadcast %cst_18 : f32 to vector<1x64xf32>
    %44 = arith.divf %42, %43 : vector<1x64xf32>
    %45 = arith.mulf %39, %39 : vector<1x64xf32>
    %46 = arith.subf %44, %45 : vector<1x64xf32>
    %cst_19 = arith.constant 9.99999974E-6 : f32
    %47 = vector.broadcast %cst_19 : f32 to vector<1x64xf32>
    %48 = arith.addf %46, %47 : vector<1x64xf32>
    %49 = math.rsqrt %48 : vector<1x64xf32>
    %50 = arith.mulf %32, %49 : vector<1x64xf32>
    %51 = arith.mulf %39, %50 : vector<1x64xf32>
    %52 = arith.subf %33, %51 : vector<1x64xf32>
    %53 = vector.broadcast %50 : vector<1x64xf32> to vector<256x64xf32>
    %54 = arith.mulf %35, %53 : vector<256x64xf32>
    %55 = vector.broadcast %52 : vector<1x64xf32> to vector<256x64xf32>
    %56 = arith.addf %54, %55 : vector<256x64xf32>
    %cst_20 = arith.constant 0.000000e+00 : f32
    %57 = vector.broadcast %cst_20 : f32 to vector<256x64xf32>
    %58 = arith.cmpf ogt, %56, %57 : vector<256x64xf32>
    %cst_21 = arith.constant 3.000000e-01 : f32
    %59 = vector.broadcast %cst_21 : f32 to vector<256x64xf32>
    %60 = arith.mulf %59, %56 : vector<256x64xf32>
    %61 = arith.select %58, %56, %60 : vector<256x64xi1>, vector<256x64xf32>
    %62 = vector.extract_strided_slice %0 {offsets = [4, 0], sizes = [1, 64], strides = [1, 1]} : vector<9x128xf32> to vector<1x64xf32>
    %63 = vector.extract_strided_slice %0 {offsets = [5, 0], sizes = [1, 64], strides = [1, 1]} : vector<9x128xf32> to vector<1x64xf32>
    %c0_22 = arith.constant 0 : index
    %c0_23 = arith.constant 0 : index
    %64 = vector.load %arg3[%c0_22, %c0_23] : memref<64x64xf32, #tpu.memory_space<vmem>>, vector<64x64xf32>
    %cst_24 = arith.constant dense<0.000000e+00> : vector<256x64xf32>
    %65 = tpu.matmul %61, %64, %cst_24 {dimension_numbers = #tpu.dot_dimension_numbers<[1], [0], [0], [1], [0, 0, 1, 1], [], []>} : vector<256x64xf32>, vector<64x64xf32>, vector<256x64xf32> -> vector<256x64xf32>
    %cst_25 = arith.constant dense<0.000000e+00> : vector<64xf32>
    %66 = vector.multi_reduction <add>, %65, %cst_25 [0] : vector<256x64xf32> to vector<64xf32>
    %67 = vector.shape_cast %66 : vector<64xf32> to vector<1x64xf32>
    %cst_26 = arith.constant 2.560000e+02 : f32
    %68 = vector.broadcast %cst_26 : f32 to vector<1x64xf32>
    %69 = arith.divf %67, %68 : vector<1x64xf32>
    %70 = arith.mulf %65, %65 : vector<256x64xf32>
    %cst_27 = arith.constant dense<0.000000e+00> : vector<64xf32>
    %71 = vector.multi_reduction <add>, %70, %cst_27 [0] : vector<256x64xf32> to vector<64xf32>
    %72 = vector.shape_cast %71 : vector<64xf32> to vector<1x64xf32>
    %cst_28 = arith.constant 2.560000e+02 : f32
    %73 = vector.broadcast %cst_28 : f32 to vector<1x64xf32>
    %74 = arith.divf %72, %73 : vector<1x64xf32>
    %75 = arith.mulf %69, %69 : vector<1x64xf32>
    %76 = arith.subf %74, %75 : vector<1x64xf32>
    %cst_29 = arith.constant 9.99999974E-6 : f32
    %77 = vector.broadcast %cst_29 : f32 to vector<1x64xf32>
    %78 = arith.addf %76, %77 : vector<1x64xf32>
    %79 = math.rsqrt %78 : vector<1x64xf32>
    %80 = arith.mulf %62, %79 : vector<1x64xf32>
    %81 = arith.mulf %69, %80 : vector<1x64xf32>
    %82 = arith.subf %63, %81 : vector<1x64xf32>
    %83 = vector.broadcast %80 : vector<1x64xf32> to vector<256x64xf32>
    %84 = arith.mulf %65, %83 : vector<256x64xf32>
    %85 = vector.broadcast %82 : vector<1x64xf32> to vector<256x64xf32>
    %86 = arith.addf %84, %85 : vector<256x64xf32>
    %cst_30 = arith.constant 0.000000e+00 : f32
    %87 = vector.broadcast %cst_30 : f32 to vector<256x64xf32>
    %88 = arith.cmpf ogt, %86, %87 : vector<256x64xf32>
    %cst_31 = arith.constant 3.000000e-01 : f32
    %89 = vector.broadcast %cst_31 : f32 to vector<256x64xf32>
    %90 = arith.mulf %89, %86 : vector<256x64xf32>
    %91 = arith.select %88, %86, %90 : vector<256x64xi1>, vector<256x64xf32>
    %92 = vector.extract_strided_slice %0 {offsets = [6, 0], sizes = [1, 32], strides = [1, 1]} : vector<9x128xf32> to vector<1x32xf32>
    %93 = vector.extract_strided_slice %0 {offsets = [7, 0], sizes = [1, 32], strides = [1, 1]} : vector<9x128xf32> to vector<1x32xf32>
    %c0_32 = arith.constant 0 : index
    %c0_33 = arith.constant 0 : index
    %94 = vector.load %arg4[%c0_32, %c0_33] : memref<64x32xf32, #tpu.memory_space<vmem>>, vector<64x32xf32>
    %cst_34 = arith.constant dense<0.000000e+00> : vector<256x32xf32>
    %95 = tpu.matmul %91, %94, %cst_34 {dimension_numbers = #tpu.dot_dimension_numbers<[1], [0], [0], [1], [0, 0, 1, 1], [], []>} : vector<256x64xf32>, vector<64x32xf32>, vector<256x32xf32> -> vector<256x32xf32>
    %cst_35 = arith.constant dense<0.000000e+00> : vector<32xf32>
    %96 = vector.multi_reduction <add>, %95, %cst_35 [0] : vector<256x32xf32> to vector<32xf32>
    %97 = vector.shape_cast %96 : vector<32xf32> to vector<1x32xf32>
    %cst_36 = arith.constant 2.560000e+02 : f32
    %98 = vector.broadcast %cst_36 : f32 to vector<1x32xf32>
    %99 = arith.divf %97, %98 : vector<1x32xf32>
    %100 = arith.mulf %95, %95 : vector<256x32xf32>
    %cst_37 = arith.constant dense<0.000000e+00> : vector<32xf32>
    %101 = vector.multi_reduction <add>, %100, %cst_37 [0] : vector<256x32xf32> to vector<32xf32>
    %102 = vector.shape_cast %101 : vector<32xf32> to vector<1x32xf32>
    %cst_38 = arith.constant 2.560000e+02 : f32
    %103 = vector.broadcast %cst_38 : f32 to vector<1x32xf32>
    %104 = arith.divf %102, %103 : vector<1x32xf32>
    %105 = arith.mulf %99, %99 : vector<1x32xf32>
    %106 = arith.subf %104, %105 : vector<1x32xf32>
    %cst_39 = arith.constant 9.99999974E-6 : f32
    %107 = vector.broadcast %cst_39 : f32 to vector<1x32xf32>
    %108 = arith.addf %106, %107 : vector<1x32xf32>
    %109 = math.rsqrt %108 : vector<1x32xf32>
    %110 = arith.mulf %92, %109 : vector<1x32xf32>
    %111 = arith.mulf %99, %110 : vector<1x32xf32>
    %112 = arith.subf %93, %111 : vector<1x32xf32>
    %113 = vector.broadcast %110 : vector<1x32xf32> to vector<256x32xf32>
    %114 = arith.mulf %95, %113 : vector<256x32xf32>
    %115 = vector.broadcast %112 : vector<1x32xf32> to vector<256x32xf32>
    %116 = arith.addf %114, %115 : vector<256x32xf32>
    %cst_40 = arith.constant 0.000000e+00 : f32
    %117 = vector.broadcast %cst_40 : f32 to vector<256x32xf32>
    %118 = arith.cmpf ogt, %116, %117 : vector<256x32xf32>
    %cst_41 = arith.constant 3.000000e-01 : f32
    %119 = vector.broadcast %cst_41 : f32 to vector<256x32xf32>
    %120 = arith.mulf %119, %116 : vector<256x32xf32>
    %121 = arith.select %118, %116, %120 : vector<256x32xi1>, vector<256x32xf32>
    %122 = vector.extract_strided_slice %0 {offsets = [8, 0], sizes = [1, 24], strides = [1, 1]} : vector<9x128xf32> to vector<1x24xf32>
    %c0_42 = arith.constant 0 : index
    %c0_43 = arith.constant 0 : index
    %123 = vector.load %arg5[%c0_42, %c0_43] : memref<32x24xf32, #tpu.memory_space<vmem>>, vector<32x24xf32>
    %cst_44 = arith.constant dense<0.000000e+00> : vector<256x24xf32>
    %124 = tpu.matmul %121, %123, %cst_44 {dimension_numbers = #tpu.dot_dimension_numbers<[1], [0], [0], [1], [0, 0, 1, 1], [], []>} : vector<256x32xf32>, vector<32x24xf32>, vector<256x24xf32> -> vector<256x24xf32>
    %125 = vector.broadcast %122 : vector<1x24xf32> to vector<256x24xf32>
    %126 = arith.addf %124, %125 : vector<256x24xf32>
    %127 = math.tanh %126 : vector<256x24xf32>
    %c0_45 = arith.constant 0 : index
    %c0_46 = arith.constant 0 : index
    %128 = vector.load %arg7[%c0_45, %c0_46] : memref<256x24xf32, #tpu.memory_space<vmem>>, vector<256x24xf32>
    tpu.vector_store %arg7[%c0_45, %c0_46], %127 {strides = array<i32>} : memref<256x24xf32, #tpu.memory_space<vmem>>, vector<256x24xf32>,
    return
  }
}

</mosaic_0001>

<llo_original>
// kernel: tpu_custom_call.1
$region0: #{tpu_custom_call.1}
  #allocation0 [shape = 'u32[]', space=smem, size = 0x4, offset = 0x4, fixed_abs, tag = 'smem constant byte address 0x4 - core index']
  #allocation1 [shape = 'u32[144,128]{1,0:T(1,128)}', space=vmem, size = 0x12000, scoped, tag = 'internal scratch']
  %s0 = inlined_call_operand.vmem [shape: f32[256,21], index: 0, kind: input, shape index: {}]
  %s1 = inlined_call_operand.vmem [shape: f32[21,32], index: 1, kind: input, shape index: {}]
  %s2 = inlined_call_operand.vmem [shape: f32[32,64], index: 2, kind: input, shape index: {}]
  %s3 = inlined_call_operand.vmem [shape: f32[64,64], index: 3, kind: input, shape index: {}]
  %s4 = inlined_call_operand.vmem [shape: f32[64,32], index: 4, kind: input, shape index: {}]
  %s5 = inlined_call_operand.vmem [shape: f32[32,24], index: 5, kind: input, shape index: {}]
  %s6 = inlined_call_operand.vmem [shape: f32[9,128], index: 6, kind: input, shape index: {}]
  %s7 = inlined_call_operand.vmem [shape: f32[256,24], index: 7, kind: output, shape index: {}]
  %s8 = sld [smem:[#allocation0]]
  $region38: #{tpu_custom_call.1} parent=0
    _
  %s10 = ssub.s32 1, %s8
  %s11 = scalar_select 0, %s10, %s8
  // Predicated region
  $region2: #{tpu_custom_call.1} parent=0 // pred_check
    _
  $region3: #{tpu_custom_call.1} parent=0 // pred_check_branch
    %13 = sbr.rel (0) target = $region5
  $region4: #{tpu_custom_call.1} parent=0 // pred_region
    _
  $region5: #{tpu_custom_call.1} parent=0 // pred_fallthru
    _
  // Predicated region
  $region6: #{tpu_custom_call.1} parent=0 // pred_check
    _
  $region7: #{tpu_custom_call.1} parent=0 // pred_check_branch
    %15 = sbr.rel (0) target = $region9
  $region8: #{tpu_custom_call.1} parent=0 // pred_region
    _
  $region9: #{tpu_custom_call.1} parent=0 // pred_fallthru
    _
  // Predicated region
  $region10: #{tpu_custom_call.1} parent=0 // pred_check
    _
  $region11: #{tpu_custom_call.1} parent=0 // pred_check_branch
    %17 = sbr.rel (0) target = $region13
  $region12: #{tpu_custom_call.1} parent=0 // pred_region
    _
  $region13: #{tpu_custom_call.1} parent=0 // pred_fallthru
    _
  // Predicated region
  $region14: #{tpu_custom_call.1} parent=0 // pred_check
    _
  $region15: #{tpu_custom_call.1} parent=0 // pred_check_branch
    %19 = sbr.rel (0) target = $region17
  $region16: #{tpu_custom_call.1} parent=0 // pred_region
    _
  $region17: #{tpu_custom_call.1} parent=0 // pred_fallthru
    _
  // Predicated region
  $region18: #{tpu_custom_call.1} parent=0 // pred_check
    _
  $region19: #{tpu_custom_call.1} parent=0 // pred_check_branch
    %21 = sbr.rel (0) target = $region21
  $region20: #{tpu_custom_call.1} parent=0 // pred_region
    _
  $region21: #{tpu_custom_call.1} parent=0 // pred_fallthru
    _
  // Predicated region
  $region22: #{tpu_custom_call.1} parent=0 // pred_check
    _
  $region23: #{tpu_custom_call.1} parent=0 // pred_check_branch
    %23 = sbr.rel (0) target = $region25
  $region24: #{tpu_custom_call.1} parent=0 // pred_region
    _
  $region25: #{tpu_custom_call.1} parent=0 // pred_fallthru
    _
  // Predicated region
  $region26: #{tpu_custom_call.1} parent=0 // pred_check
    _
  $region27: #{tpu_custom_call.1} parent=0 // pred_check_branch
    %25 = sbr.rel (0) target = $region29
  $region28: #{tpu_custom_call.1} parent=0 // pred_region
    _
  $region29: #{tpu_custom_call.1} parent=0 // pred_fallthru
    _
  %v26 = vld [vmem:[%s6] sm:$0xff]
  %v27 = vld [vmem:[%s6 + $0x8] sm:$0x1]
  %v28 = vld [vmem:[%s0] sm:$0xff]
  %v29 = vld [vmem:[%s0 + $0x8] sm:$0xff]
  %v30 = vld [vmem:[%s0 + $0x10] sm:$0xff]
  %v31 = vld [vmem:[%s0 + $0x18] sm:$0xff]
  %v32 = vld [vmem:[%s0 + $0x20] sm:$0xff]
  %v33 = vld [vmem:[%s0 + $0x28] sm:$0xff]
  %v34 = vld [vmem:[%s0 + $0x30] sm:$0xff]
  %v35 = vld [vmem:[%s0 + $0x38] sm:$0xff]
  %v36 = vld [vmem:[%s0 + $0x40] sm:$0xff]
  %v37 = vld [vmem:[%s0 + $0x48] sm:$0xff]
  %v38 = vld [vmem:[%s0 + $0x50] sm:$0xff]
  %v39 = vld [vmem:[%s0 + $0x58] sm:$0xff]
  %v40 = vld [vmem:[%s0 + $0x60] sm:$0xff]
  %v41 = vld [vmem:[%s0 + $0x68] sm:$0xff]
  %v42 = vld [vmem:[%s0 + $0x70] sm:$0xff]
  %v43 = vld [vmem:[%s0 + $0x78] sm:$0xff]
  %v44 = vld [vmem:[%s0 + $0x80] sm:$0xff]
  %v45 = vld [vmem:[%s0 + $0x88] sm:$0xff]
  %v46 = vld [vmem:[%s0 + $0x90] sm:$0xff]
  %v47 = vld [vmem:[%s0 + $0x98] sm:$0xff]
  %v48 = vld [vmem:[%s0 + $0xa0] sm:$0xff]
  %v49 = vld [vmem:[%s0 + $0xa8] sm:$0xff]
  %v50 = vld [vmem:[%s0 + $0xb0] sm:$0xff]
  %v51 = vld [vmem:[%s0 + $0xb8] sm:$0xff]
  %v52 = vld [vmem:[%s0 + $0xc0] sm:$0xff]
  %v53 = vld [vmem:[%s0 + $0xc8] sm:$0xff]
  %v54 = vld [vmem:[%s0 + $0xd0] sm:$0xff]
  %v55 = vld [vmem:[%s0 + $0xd8] sm:$0xff]
  %v56 = vld [vmem:[%s0 + $0xe0] sm:$0xff]
  %v57 = vld [vmem:[%s0 + $0xe8] sm:$0xff]
  %v58 = vld [vmem:[%s0 + $0xf0] sm:$0xff]
  %v59 = vld [vmem:[%s0 + $0xf8] sm:$0xff]
  %v60 = vld [vmem:[%s1] sm:$0xff]
  %v61 = vld [vmem:[%s1 + $0x8] sm:$0xff]
  %v62 = vld [vmem:[%s1 + $0x10] sm:$0x1f]
  %vm63 = vcmask 171008
  %v65 = vsel %vm63, %v28, 0
  %v68 = vsel %vm63, %v29, 0
  %v71 = vsel %vm63, %v30, 0
  %v74 = vsel %vm63, %v31, 0
  %v77 = vsel %vm63, %v32, 0
  %v80 = vsel %vm63, %v33, 0
  %v83 = vsel %vm63, %v34, 0
  %v86 = vsel %vm63, %v35, 0
  %v89 = vsel %vm63, %v36, 0
  %v92 = vsel %vm63, %v37, 0
  %v95 = vsel %vm63, %v38, 0
  %v98 = vsel %vm63, %v39, 0
  %v101 = vsel %vm63, %v40, 0
  %v104 = vsel %vm63, %v41, 0
  %v107 = vsel %vm63, %v42, 0
  %v110 = vsel %vm63, %v43, 0
  %v113 = vsel %vm63, %v44, 0
  %v116 = vsel %vm63, %v45, 0
  %v119 = vsel %vm63, %v46, 0
  %v122 = vsel %vm63, %v47, 0
  %v125 = vsel %vm63, %v48, 0
  %v128 = vsel %vm63, %v49, 0
  %v131 = vsel %vm63, %v50, 0
  %v134 = vsel %vm63, %v51, 0
  %v137 = vsel %vm63, %v52, 0
  %v140 = vsel %vm63, %v53, 0
  %v143 = vsel %vm63, %v54, 0
  %v146 = vsel %vm63, %v55, 0
  %v149 = vsel %vm63, %v56, 0
  %v152 = vsel %vm63, %v57, 0
  %v155 = vsel %vm63, %v58, 0
  %v158 = vsel %vm63, %v59, 0
  %vm160 = vcmask 1044480
  %v162 = vsel %vm160, %v62, 0
  %164 = vmatprep.subr.mxu0 0.0
  %165 = vmatpush1.msra.mxu0 %v60
  %166 = vmatprep.subr.mxu0 0.0
  %167 = vmatpush1.msra.mxu0 %v61
  %168 = vmatprep.subr.mxu0 0.0
  %169 = vmatpush1.msra.mxu0 %v162
  %170 = vmatprep.subr.mxu0 0.0
  %171 = vmatpush1.msra.mxu0 0.0
  %172 = vmatprep.subr.mxu0 0.0
  %173 = vmatpush1.msra.mxu0 0.0
  %174 = vmatprep.subr.mxu0 0.0
  %175 = vmatpush1.msra.mxu0 0.0
  %176 = vmatprep.subr.mxu0 0.0
  %177 = vmatpush1.msra.mxu0 0.0
  %178 = vmatprep.subr.mxu0 0.0
  %179 = vmatpush1.msra.mxu0 0.0
  %180 = vmatprep.subr.mxu0 0.0
  %181 = vmatpush1.msra.mxu0 0.0
  %182 = vmatprep.subr.mxu0 0.0
  %183 = vmatpush1.msra.mxu0 0.0
  %184 = vmatprep.subr.mxu0 0.0
  %185 = vmatpush1.msra.mxu0 0.0
  %186 = vmatprep.subr.mxu0 0.0
  %187 = vmatpush1.msra.mxu0 0.0
  %188 = vmatprep.subr.mxu0 0.0
  %189 = vmatpush1.msra.mxu0 0.0
  %190 = vmatprep.subr.mxu0 0.0
  %191 = vmatpush1.msra.mxu0 0.0
  %192 = vmatprep.subr.mxu0 0.0
  %193 = vmatpush1.msra.mxu0 0.0
  %194 = vmatprep.subr.mxu0 0.0
  %195 = vmatpush1.msra.mxu0 0.0
  %196 = vmatprep.subr.mxu0 0.0
  %197 = vmatpush1.msra.mxu0 0.0
  %198 = vmatprep.subr.mxu0 0.0
  %199 = vmatpush1.msra.mxu0 0.0
  %200 = vmatprep.subr.mxu0 0.0
  %201 = vmatpush1.msra.mxu0 0.0
  %202 = vmatprep.subr.mxu0 0.0
  %203 = vmatpush1.msra.mxu0 0.0
  %204 = vmatprep.subr.mxu0 0.0
  %205 = vmatpush1.msra.mxu0 0.0
  %206 = vmatprep.subr.mxu0 0.0
  %207 = vmatpush1.msra.mxu0 0.0
  %208 = vmatprep.subr.mxu0 0.0
  %209 = vmatpush1.msra.mxu0 0.0
  %210 = vmatprep.subr.mxu0 0.0
  %211 = vmatpush1.msra.mxu0 0.0
  %212 = vmatprep.subr.mxu0 0.0
  %213 = vmatpush1.msra.mxu0 0.0
  %214 = vmatprep.subr.mxu0 0.0
  %215 = vmatpush1.msra.mxu0 0.0
  %216 = vmatprep.subr.mxu0 0.0
  %217 = vmatpush1.msra.mxu0 0.0
  %218 = vmatprep.subr.mxu0 0.0
  %219 = vmatpush1.msra.mxu0 0.0
  %220 = vmatprep.subr.mxu0 0.0
  %221 = vmatpush1.msra.mxu0 0.0
  %222 = vmatprep.subr.mxu0 0.0
  %223 = vmatpush1.msra.mxu0 0.0
  %224 = vmatprep.subr.mxu0 0.0
  %225 = vmatpush1.msra.mxu0 0.0
  %226 = vmatprep.subr.mxu0 0.0
  %227 = vmatpush1.msra.mxu0 0.0
  %228 = vmatprep.mubr.f32.mxu0 0.0
  %229 = vmatmul.mubr.f32.gmra.mrb[0].mxu0 %v65
  %v230 = vpop.f32.mrb[0].mxu0
  %v231 = vadd.f32 0.0, %v230
  %v232 = vpop.f32.mrb[0].mxu0
  %233 = vmatprep.mubr.f32.mxu0 0.0
  %234 = vmatmul.mubr.f32.gmra.mrb[0].mxu0 %v68
  %v235 = vpop.f32.mrb[0].mxu0
  %v236 = vadd.f32 0.0, %v235
  %v237 = vpop.f32.mrb[0].mxu0
  %238 = vmatprep.mubr.f32.mxu0 0.0
  %239 = vmatmul.mubr.f32.gmra.mrb[0].mxu0 %v71
  %v240 = vpop.f32.mrb[0].mxu0
  %v241 = vadd.f32 0.0, %v240
  %v242 = vpop.f32.mrb[0].mxu0
  %243 = vmatprep.mubr.f32.mxu0 0.0
  %244 = vmatmul.mubr.f32.gmra.mrb[0].mxu0 %v74
  %v245 = vpop.f32.mrb[0].mxu0
  %v246 = vadd.f32 0.0, %v245
  %v247 = vpop.f32.mrb[0].mxu0
  %248 = vmatprep.mubr.f32.mxu0 0.0
  %249 = vmatmul.mubr.f32.gmra.mrb[0].mxu0 %v77
  %v250 = vpop.f32.mrb[0].mxu0
  %v251 = vadd.f32 0.0, %v250
  %v252 = vpop.f32.mrb[0].mxu0
  %253 = vmatprep.mubr.f32.mxu0 0.0
  %254 = vmatmul.mubr.f32.gmra.mrb[0].mxu0 %v80
  %v255 = vpop.f32.mrb[0].mxu0
  %v256 = vadd.f32 0.0, %v255
  %v257 = vpop.f32.mrb[0].mxu0
  %258 = vmatprep.mubr.f32.mxu0 0.0
  %259 = vmatmul.mubr.f32.gmra.mrb[0].mxu0 %v83
  %v260 = vpop.f32.mrb[0].mxu0
  %v261 = vadd.f32 0.0, %v260
  %v262 = vpop.f32.mrb[0].mxu0
  %263 = vmatprep.mubr.f32.mxu0 0.0
  %264 = vmatmul.mubr.f32.gmra.mrb[0].mxu0 %v86
  %v265 = vpop.f32.mrb[0].mxu0
  %v266 = vadd.f32 0.0, %v265
  %v267 = vpop.f32.mrb[0].mxu0
  %268 = vmatprep.mubr.f32.mxu0 0.0
  %269 = vmatmul.mubr.f32.gmra.mrb[0].mxu0 %v89
  %v270 = vpop.f32.mrb[0].mxu0
  %v271 = vadd.f32 0.0, %v270
  %v272 = vpop.f32.mrb[0].mxu0
  %273 = vmatprep.mubr.f32.mxu0 0.0
  %274 = vmatmul.mubr.f32.gmra.mrb[0].mxu0 %v92
  %v275 = vpop.f32.mrb[0].mxu0
  %v276 = vadd.f32 0.0, %v275
  %v277 = vpop.f32.mrb[0].mxu0
  %278 = vmatprep.mubr.f32.mxu0 0.0
  %279 = vmatmul.mubr.f32.gmra.mrb[0].mxu0 %v95
  %v280 = vpop.f32.mrb[0].mxu0
  %v281 = vadd.f32 0.0, %v280
  %v282 = vpop.f32.mrb[0].mxu0
  %283 = vmatprep.mubr.f32.mxu0 0.0
  %284 = vmatmul.mubr.f32.gmra.mrb[0].mxu0 %v98
  %v285 = vpop.f32.mrb[0].mxu0
  %v286 = vadd.f32 0.0, %v285
  %v287 = vpop.f32.mrb[0].mxu0
  %288 = vmatprep.mubr.f32.mxu0 0.0
  %289 = vmatmul.mubr.f32.gmra.mrb[0].mxu0 %v101
  %v290 = vpop.f32.mrb[0].mxu0
  %v291 = vadd.f32 0.0, %v290
  %v292 = vpop.f32.mrb[0].mxu0
  %293 = vmatprep.mubr.f32.mxu0 0.0
  %294 = vmatmul.mubr.f32.gmra.mrb[0].mxu0 %v104
  %v295 = vpop.f32.mrb[0].mxu0
  %v296 = vadd.f32 0.0, %v295
  %v297 = vpop.f32.mrb[0].mxu0
  %298 = vmatprep.mubr.f32.mxu0 0.0
  %299 = vmatmul.mubr.f32.gmra.mrb[0].mxu0 %v107
  %v300 = vpop.f32.mrb[0].mxu0
  %v301 = vadd.f32 0.0, %v300
  %v302 = vpop.f32.mrb[0].mxu0
  %303 = vmatprep.mubr.f32.mxu0 0.0
  %304 = vmatmul.mubr.f32.gmra.mrb[0].mxu0 %v110
  %v305 = vpop.f32.mrb[0].mxu0
  %v306 = vadd.f32 0.0, %v305
  %v307 = vpop.f32.mrb[0].mxu0
  %308 = vmatprep.mubr.f32.mxu0 0.0
  %309 = vmatmul.mubr.f32.gmra.mrb[0].mxu0 %v113
  %v310 = vpop.f32.mrb[0].mxu0
  %v311 = vadd.f32 0.0, %v310
  %v312 = vpop.f32.mrb[0].mxu0
  %313 = vmatprep.mubr.f32.mxu0 0.0
  %314 = vmatmul.mubr.f32.gmra.mrb[0].mxu0 %v116
  %v315 = vpop.f32.mrb[0].mxu0
  %v316 = vadd.f32 0.0, %v315
  %v317 = vpop.f32.mrb[0].mxu0
  %318 = vmatprep.mubr.f32.mxu0 0.0
  %319 = vmatmul.mubr.f32.gmra.mrb[0].mxu0 %v119
  %v320 = vpop.f32.mrb[0].mxu0
  %v321 = vadd.f32 0.0, %v320
  %v322 = vpop.f32.mrb[0].mxu0
  %323 = vmatprep.mubr.f32.mxu0 0.0
  %324 = vmatmul.mubr.f32.gmra.mrb[0].mxu0 %v122
  %v325 = vpop.f32.mrb[0].mxu0
  %v326 = vadd.f32 0.0, %v325
  %v327 = vpop.f32.mrb[0].mxu0
  %328 = vmatprep.mubr.f32.mxu0 0.0
  %329 = vmatmul.mubr.f32.gmra.mrb[0].mxu0 %v125
  %v330 = vpop.f32.mrb[0].mxu0
  %v331 = vadd.f32 0.0, %v330
  %v332 = vpop.f32.mrb[0].mxu0
  %333 = vmatprep.mubr.f32.mxu0 0.0
  %334 = vmatmul.mubr.f32.gmra.mrb[0].mxu0 %v128
  %v335 = vpop.f32.mrb[0].mxu0
  %v336 = vadd.f32 0.0, %v335
  %v337 = vpop.f32.mrb[0].mxu0
  %338 = vmatprep.mubr.f32.mxu0 0.0
  %339 = vmatmul.mubr.f32.gmra.mrb[0].mxu0 %v131
  %v340 = vpop.f32.mrb[0].mxu0
  %v341 = vadd.f32 0.0, %v340
  %v342 = vpop.f32.mrb[0].mxu0
  %343 = vmatprep.mubr.f32.mxu0 0.0
  %344 = vmatmul.mubr.f32.gmra.mrb[0].mxu0 %v134
  %v345 = vpop.f32.mrb[0].mxu0
  %v346 = vadd.f32 0.0, %v345
  %v347 = vpop.f32.mrb[0].mxu0
  %348 = vmatprep.mubr.f32.mxu0 0.0
  %349 = vmatmul.mubr.f32.gmra.mrb[0].mxu0 %v137
  %v350 = vpop.f32.mrb[0].mxu0
  %v351 = vadd.f32 0.0, %v350
  %v352 = vpop.f32.mrb[0].mxu0
  %353 = vmatprep.mubr.f32.mxu0 0.0
  %354 = vmatmul.mubr.f32.gmra.mrb[0].mxu0 %v140
  %v355 = vpop.f32.mrb[0].mxu0
  %v356 = vadd.f32 0.0, %v355
  %v357 = vpop.f32.mrb[0].mxu0
  %358 = vmatprep.mubr.f32.mxu0 0.0
  %359 = vmatmul.mubr.f32.gmra.mrb[0].mxu0 %v143
  %v360 = vpop.f32.mrb[0].mxu0
  %v361 = vadd.f32 0.0, %v360
  %v362 = vpop.f32.mrb[0].mxu0
  %363 = vmatprep.mubr.f32.mxu0 0.0
  %364 = vmatmul.mubr.f32.gmra.mrb[0].mxu0 %v146
  %v365 = vpop.f32.mrb[0].mxu0
  %v366 = vadd.f32 0.0, %v365
  %v367 = vpop.f32.mrb[0].mxu0
  %368 = vmatprep.mubr.f32.mxu0 0.0
  %369 = vmatmul.mubr.f32.gmra.mrb[0].mxu0 %v149
  %v370 = vpop.f32.mrb[0].mxu0
  %v371 = vadd.f32 0.0, %v370
  %v372 = vpop.f32.mrb[0].mxu0
  %373 = vmatprep.mubr.f32.mxu0 0.0
  %374 = vmatmul.mubr.f32.gmra.mrb[0].mxu0 %v152
  %v375 = vpop.f32.mrb[0].mxu0
  %v376 = vadd.f32 0.0, %v375
  %v377 = vpop.f32.mrb[0].mxu0
  %378 = vmatprep.mubr.f32.mxu0 0.0
  %379 = vmatmul.mubr.f32.gmra.mrb[0].mxu0 %v155
  %v380 = vpop.f32.mrb[0].mxu0
  %v381 = vadd.f32 0.0, %v380
  %v382 = vpop.f32.mrb[0].mxu0
  %383 = vmatprep.mubr.f32.mxu0 0.0
  %384 = vmatmul.mubr.f32.gmra.mrb[0].mxu0 %v158
  %v385 = vpop.f32.mrb[0].mxu0
  %v386 = vadd.f32 0.0, %v385
  %v387 = vpop.f32.mrb[0].mxu0
  %388 = vdwg.mxu0
  %vm389 = vcmask 261120
  %v390 = vsel %vm389, %v231, 0.0
  %v391 = vsel %vm389, %v236, 0.0
  %v392 = vadd.f32 %v390, %v391
  %v393 = vsel %vm389, %v241, 0.0
  %v394 = vadd.f32 %v392, %v393
  %v395 = vsel %vm389, %v246, 0.0
  %v396 = vadd.f32 %v394, %v395
  %v397 = vsel %vm389, %v251, 0.0
  %v398 = vadd.f32 %v396, %v397
  %v399 = vsel %vm389, %v256, 0.0
  %v400 = vadd.f32 %v398, %v399
  %v401 = vsel %vm389, %v261, 0.0
  %v402 = vadd.f32 %v400, %v401
  %v403 = vsel %vm389, %v266, 0.0
  %v404 = vadd.f32 %v402, %v403
  %v405 = vsel %vm389, %v271, 0.0
  %v406 = vadd.f32 %v404, %v405
  %v407 = vsel %vm389, %v276, 0.0
  %v408 = vadd.f32 %v406, %v407
  %v409 = vsel %vm389, %v281, 0.0
  %v410 = vadd.f32 %v408, %v409
  %v411 = vsel %vm389, %v286, 0.0
  %v412 = vadd.f32 %v410, %v411
  %v413 = vsel %vm389, %v291, 0.0
  %v414 = vadd.f32 %v412, %v413
  %v415 = vsel %vm389, %v296, 0.0
  %v416 = vadd.f32 %v414, %v415
  %v417 = vsel %vm389, %v301, 0.0
  %v418 = vadd.f32 %v416, %v417
  %v419 = vsel %vm389, %v306, 0.0
  %v420 = vadd.f32 %v418, %v419
  %v421 = vsel %vm389, %v311, 0.0
  %v422 = vadd.f32 %v420, %v421
  %v423 = vsel %vm389, %v316, 0.0
  %v424 = vadd.f32 %v422, %v423
  %v425 = vsel %vm389, %v321, 0.0
  %v426 = vadd.f32 %v424, %v425
  %v427 = vsel %vm389, %v326, 0.0
  %v428 = vadd.f32 %v426, %v427
  %v429 = vsel %vm389, %v331, 0.0
  %v430 = vadd.f32 %v428, %v429
  %v431 = vsel %vm389, %v336, 0.0
  %v432 = vadd.f32 %v430, %v431
  %v433 = vsel %vm389, %v341, 0.0
  %v434 = vadd.f32 %v432, %v433
  %v435 = vsel %vm389, %v346, 0.0
  %v436 = vadd.f32 %v434, %v435
  %v437 = vsel %vm389, %v351, 0.0
  %v438 = vadd.f32 %v436, %v437
  %v439 = vsel %vm389, %v356, 0.0
  %v440 = vadd.f32 %v438, %v439
  %v441 = vsel %vm389, %v361, 0.0
  %v442 = vadd.f32 %v440, %v441
  %v443 = vsel %vm389, %v366, 0.0
  %v444 = vadd.f32 %v442, %v443
  %v445 = vsel %vm389, %v371, 0.0
  %v446 = vadd.f32 %v444, %v445
  %v447 = vsel %vm389, %v376, 0.0
  %v448 = vadd.f32 %v446, %v447
  %v449 = vsel %vm389, %v381, 0.0
  %v450 = vadd.f32 %v448, %v449
  %v451 = vsel %vm389, %v386, 0.0
  %v452 = vadd.f32 %v450, %v451
  %v453 = vrot.slane %v452, 4
  %v454 = vadd.f32 %v452, %v453
  %v455 = vrot.slane %v454, 2
  %v456 = vadd.f32 %v454, %v455
  %v457 = vrot.slane %v456, 1
  %v458 = vadd.f32 %v456, %v457
  %v459 = vrcp.pop 256.0
  %v460 = vmul.f32 %v458, %v459
  %v461 = vmul.f32 %v231, %v231
  %v462 = vmul.f32 %v236, %v236
  %v463 = vmul.f32 %v241, %v241
  %v464 = vmul.f32 %v246, %v246
  %v465 = vmul.f32 %v251, %v251
  %v466 = vmul.f32 %v256, %v256
  %v467 = vmul.f32 %v261, %v261
  %v468 = vmul.f32 %v266, %v266
  %v469 = vmul.f32 %v271, %v271
  %v470 = vmul.f32 %v276, %v276
  %v471 = vmul.f32 %v281, %v281
  %v472 = vmul.f32 %v286, %v286
  %v473 = vmul.f32 %v291, %v291
  %v474 = vmul.f32 %v296, %v296
  %v475 = vmul.f32 %v301, %v301
  %v476 = vmul.f32 %v306, %v306
  %v477 = vmul.f32 %v311, %v311
  %v478 = vmul.f32 %v316, %v316
  %v479 = vmul.f32 %v321, %v321
  %v480 = vmul.f32 %v326, %v326
  %v481 = vmul.f32 %v331, %v331
  %v482 = vmul.f32 %v336, %v336
  %v483 = vmul.f32 %v341, %v341
  %v484 = vmul.f32 %v346, %v346
  %v485 = vmul.f32 %v351, %v351
  %v486 = vmul.f32 %v356, %v356
  %v487 = vmul.f32 %v361, %v361
  %v488 = vmul.f32 %v366, %v366
  %v489 = vmul.f32 %v371, %v371
  %v490 = vmul.f32 %v376, %v376
  %v491 = vmul.f32 %v381, %v381
  %v492 = vmul.f32 %v386, %v386
  %v493 = vsel %vm389, %v461, 0.0
  %v494 = vsel %vm389, %v462, 0.0
  %v495 = vadd.f32 %v493, %v494
  %v496 = vsel %vm389, %v463, 0.0
  %v497 = vadd.f32 %v495, %v496
  %v498 = vsel %vm389, %v464, 0.0
  %v499 = vadd.f32 %v497, %v498
  %v500 = vsel %vm389, %v465, 0.0
  %v501 = vadd.f32 %v499, %v500
  %v502 = vsel %vm389, %v466, 0.0
  %v503 = vadd.f32 %v501, %v502
  %v504 = vsel %vm389, %v467, 0.0
  %v505 = vadd.f32 %v503, %v504
  %v506 = vsel %vm389, %v468, 0.0
  %v507 = vadd.f32 %v505, %v506
  %v508 = vsel %vm389, %v469, 0.0
  %v509 = vadd.f32 %v507, %v508
  %v510 = vsel %vm389, %v470, 0.0
  %v511 = vadd.f32 %v509, %v510
  %v512 = vsel %vm389, %v471, 0.0
  %v513 = vadd.f32 %v511, %v512
  %v514 = vsel %vm389, %v472, 0.0
  %v515 = vadd.f32 %v513, %v514
  %v516 = vsel %vm389, %v473, 0.0
  %v517 = vadd.f32 %v515, %v516
  %v518 = vsel %vm389, %v474, 0.0
  %v519 = vadd.f32 %v517, %v518
  %v520 = vsel %vm389, %v475, 0.0
  %v521 = vadd.f32 %v519, %v520
  %v522 = vsel %vm389, %v476, 0.0
  %v523 = vadd.f32 %v521, %v522
  %v524 = vsel %vm389, %v477, 0.0
  %v525 = vadd.f32 %v523, %v524
  %v526 = vsel %vm389, %v478, 0.0
  %v527 = vadd.f32 %v525, %v526
  %v528 = vsel %vm389, %v479, 0.0
  %v529 = vadd.f32 %v527, %v528
  %v530 = vsel %vm389, %v480, 0.0
  %v531 = vadd.f32 %v529, %v530
  %v532 = vsel %vm389, %v481, 0.0
  %v533 = vadd.f32 %v531, %v532
  %v534 = vsel %vm389, %v482, 0.0
  %v535 = vadd.f32 %v533, %v534
  %v536 = vsel %vm389, %v483, 0.0
  %v537 = vadd.f32 %v535, %v536
  %v538 = vsel %vm389, %v484, 0.0
  %v539 = vadd.f32 %v537, %v538
  %v540 = vsel %vm389, %v485, 0.0
  %v541 = vadd.f32 %v539, %v540
  %v542 = vsel %vm389, %v486, 0.0
  %v543 = vadd.f32 %v541, %v542
  %v544 = vsel %vm389, %v487, 0.0
  %v545 = vadd.f32 %v543, %v544
  %v546 = vsel %vm389, %v488, 0.0
  %v547 = vadd.f32 %v545, %v546
  %v548 = vsel %vm389, %v489, 0.0
  %v549 = vadd.f32 %v547, %v548
  %v550 = vsel %vm389, %v490, 0.0
  %v551 = vadd.f32 %v549, %v550
  %v552 = vsel %vm389, %v491, 0.0
  %v553 = vadd.f32 %v551, %v552
  %v554 = vsel %vm389, %v492, 0.0
  %v555 = vadd.f32 %v553, %v554
  %v556 = vrot.slane %v555, 4
  %v557 = vadd.f32 %v555, %v556
  %v558 = vrot.slane %v557, 2
  %v559 = vadd.f32 %v557, %v558
  %v560 = vrot.slane %v559, 1
  %v561 = vadd.f32 %v559, %v560
  %v562 = vmul.f32 %v561, %v459
  %v563 = vmul.f32 %v460, %v460
  %v564 = vsub.f32 %v562, %v563
  %v565 = vadd.f32 %v564, 1e-05
  %v566 = vrsqrt.pop %v565
  %v567 = vmul.f32 %v26, %v566
  %v568 = vmul.f32 %v460, %v567
  %v570 = vrot.slane %v568, 7
  %v572 = vsub.f32 %v26, %v570
  %v573 = vlaneseq
  %v574 = vshrl.u32 %v573, 7
  %v575 = vsub.s32 0, %v574
  %v576 = vrot.slane %v567, %v575
  %v577 = vmul.f32 %v231, %v576
  %v578 = vmul.f32 %v236, %v576
  %v579 = vmul.f32 %v241, %v576
  %v580 = vmul.f32 %v246, %v576
  %v581 = vmul.f32 %v251, %v576
  %v582 = vmul.f32 %v256, %v576
  %v583 = vmul.f32 %v261, %v576
  %v584 = vmul.f32 %v266, %v576
  %v585 = vmul.f32 %v271, %v576
  %v586 = vmul.f32 %v276, %v576
  %v587 = vmul.f32 %v281, %v576
  %v588 = vmul.f32 %v286, %v576
  %v589 = vmul.f32 %v291, %v576
  %v590 = vmul.f32 %v296, %v576
  %v591 = vmul.f32 %v301, %v576
  %v592 = vmul.f32 %v306, %v576
  %v593 = vmul.f32 %v311, %v576
  %v594 = vmul.f32 %v316, %v576
  %v595 = vmul.f32 %v321, %v576
  %v596 = vmul.f32 %v326, %v576
  %v597 = vmul.f32 %v331, %v576
  %v598 = vmul.f32 %v336, %v576
  %v599 = vmul.f32 %v341, %v576
  %v600 = vmul.f32 %v346, %v576
  %v601 = vmul.f32 %v351, %v576
  %v602 = vmul.f32 %v356, %v576
  %v603 = vmul.f32 %v361, %v576
  %v604 = vmul.f32 %v366, %v576
  %v605 = vmul.f32 %v371, %v576
  %v606 = vmul.f32 %v376, %v576
  %v607 = vmul.f32 %v381, %v576
  %v608 = vmul.f32 %v386, %v576
  %v609 = vlaneseq
  %v610 = vshrl.u32 %v609, 7
  %v611 = vsub.s32 1, %v610
  %v612 = vrot.slane %v572, %v611
  %v613 = vadd.f32 %v577, %v612
  %v614 = vadd.f32 %v578, %v612
  %v615 = vadd.f32 %v579, %v612
  %v616 = vadd.f32 %v580, %v612
  %v617 = vadd.f32 %v581, %v612
  %v618 = vadd.f32 %v582, %v612
  %v619 = vadd.f32 %v583, %v612
  %v620 = vadd.f32 %v584, %v612
  %v621 = vadd.f32 %v585, %v612
  %v622 = vadd.f32 %v586, %v612
  %v623 = vadd.f32 %v587, %v612
  %v624 = vadd.f32 %v588, %v612
  %v625 = vadd.f32 %v589, %v612
  %v626 = vadd.f32 %v590, %v612
  %v627 = vadd.f32 %v591, %v612
  %v628 = vadd.f32 %v592, %v612
  %v629 = vadd.f32 %v593, %v612
  %v630 = vadd.f32 %v594, %v612
  %v631 = vadd.f32 %v595, %v612
  %v632 = vadd.f32 %v596, %v612
  %v633 = vadd.f32 %v597, %v612
  %v634 = vadd.f32 %v598, %v612
  %v635 = vadd.f32 %v599, %v612
  %v636 = vadd.f32 %v600, %v612
  %v637 = vadd.f32 %v601, %v612
  %v638 = vadd.f32 %v602, %v612
  %v639 = vadd.f32 %v603, %v612
  %v640 = vadd.f32 %v604, %v612
  %v641 = vadd.f32 %v605, %v612
  %v642 = vadd.f32 %v606, %v612
  %v643 = vadd.f32 %v607, %v612
  %v644 = vadd.f32 %v608, %v612
  %vm645 = vcmp.gt.f32.partialorder %v613, 0.0
  %vm646 = vcmp.gt.f32.partialorder %v614, 0.0
  %vm647 = vcmp.gt.f32.partialorder %v615, 0.0
  %vm648 = vcmp.gt.f32.partialorder %v616, 0.0
  %vm649 = vcmp.gt.f32.partialorder %v617, 0.0
  %vm650 = vcmp.gt.f32.partialorder %v618, 0.0
  %vm651 = vcmp.gt.f32.partialorder %v619, 0.0
  %vm652 = vcmp.gt.f32.partialorder %v620, 0.0
  %vm653 = vcmp.gt.f32.partialorder %v621, 0.0
  %vm654 = vcmp.gt.f32.partialorder %v622, 0.0
  %vm655 = vcmp.gt.f32.partialorder %v623, 0.0
  %vm656 = vcmp.gt.f32.partialorder %v624, 0.0
  %vm657 = vcmp.gt.f32.partialorder %v625, 0.0
  %vm658 = vcmp.gt.f32.partialorder %v626, 0.0
  %vm659 = vcmp.gt.f32.partialorder %v627, 0.0
  %vm660 = vcmp.gt.f32.partialorder %v628, 0.0
  %vm661 = vcmp.gt.f32.partialorder %v629, 0.0
  %vm662 = vcmp.gt.f32.partialorder %v630, 0.0
  %vm663 = vcmp.gt.f32.partialorder %v631, 0.0
  %vm664 = vcmp.gt.f32.partialorder %v632, 0.0
  %vm665 = vcmp.gt.f32.partialorder %v633, 0.0
  %vm666 = vcmp.gt.f32.partialorder %v634, 0.0
  %vm667 = vcmp.gt.f32.partialorder %v635, 0.0
  %vm668 = vcmp.gt.f32.partialorder %v636, 0.0
  %vm669 = vcmp.gt.f32.partialorder %v637, 0.0
  %vm670 = vcmp.gt.f32.partialorder %v638, 0.0
  %vm671 = vcmp.gt.f32.partialorder %v639, 0.0
  %vm672 = vcmp.gt.f32.partialorder %v640, 0.0
  %vm673 = vcmp.gt.f32.partialorder %v641, 0.0
  %vm674 = vcmp.gt.f32.partialorder %v642, 0.0
  %vm675 = vcmp.gt.f32.partialorder %v643, 0.0
  %vm676 = vcmp.gt.f32.partialorder %v644, 0.0
  %v677 = vmul.f32 %v613, 0.3
  %v678 = vmul.f32 %v614, 0.3
  %v679 = vmul.f32 %v615, 0.3
  %v680 = vmul.f32 %v616, 0.3
  %v681 = vmul.f32 %v617, 0.3
  %v682 = vmul.f32 %v618, 0.3
  %v683 = vmul.f32 %v619, 0.3
  %v684 = vmul.f32 %v620, 0.3
  %v685 = vmul.f32 %v621, 0.3
  %v686 = vmul.f32 %v622, 0.3
  %v687 = vmul.f32 %v623, 0.3
  %v688 = vmul.f32 %v624, 0.3
  %v689 = vmul.f32 %v625, 0.3
  %v690 = vmul.f32 %v626, 0.3
  %v691 = vmul.f32 %v627, 0.3
  %v692 = vmul.f32 %v628, 0.3
  %v693 = vmul.f32 %v629, 0.3
  %v694 = vmul.f32 %v630, 0.3
  %v695 = vmul.f32 %v631, 0.3
  %v696 = vmul.f32 %v632, 0.3
  %v697 = vmul.f32 %v633, 0.3
  %v698 = vmul.f32 %v634, 0.3
  %v699 = vmul.f32 %v635, 0.3
  %v700 = vmul.f32 %v636, 0.3
  %v701 = vmul.f32 %v637, 0.3
  %v702 = vmul.f32 %v638, 0.3
  %v703 = vmul.f32 %v639, 0.3
  %v704 = vmul.f32 %v640, 0.3
  %v705 = vmul.f32 %v641, 0.3
  %v706 = vmul.f32 %v642, 0.3
  %v707 = vmul.f32 %v643, 0.3
  %v708 = vmul.f32 %v644, 0.3
  %v709 = vsel %vm645, %v613, %v677
  %v710 = vsel %vm646, %v614, %v678
  %v711 = vsel %vm647, %v615, %v679
  %v712 = vsel %vm648, %v616, %v680
  %v713 = vsel %vm649, %v617, %v681
  %v714 = vsel %vm650, %v618, %v682
  %v715 = vsel %vm651, %v619, %v683
  %v716 = vsel %vm652, %v620, %v684
  %v717 = vsel %vm653, %v621, %v685
  %v718 = vsel %vm654, %v622, %v686
  %v719 = vsel %vm655, %v623, %v687
  %v720 = vsel %vm656, %v624, %v688
  %v721 = vsel %vm657, %v625, %v689
  %v722 = vsel %vm658, %v626, %v690
  %v723 = vsel %vm659, %v627, %v691
  %v724 = vsel %vm660, %v628, %v692
  %v725 = vsel %vm661, %v629, %v693
  %v726 = vsel %vm662, %v630, %v694
  %v727 = vsel %vm663, %v631, %v695
  %v728 = vsel %vm664, %v632, %v696
  %v729 = vsel %vm665, %v633, %v697
  %v730 = vsel %vm666, %v634, %v698
  %v731 = vsel %vm667, %v635, %v699
  %v732 = vsel %vm668, %v636, %v700
  %v733 = vsel %vm669, %v637, %v701
  %v734 = vsel %vm670, %v638, %v702
  %v735 = vsel %vm671, %v639, %v703
  %v736 = vsel %vm672, %v640, %v704
  %v737 = vsel %vm673, %v641, %v705
  %v738 = vsel %vm674, %v642, %v706
  %v739 = vsel %vm675, %v643, %v707
  %v740 = vsel %vm676, %v644, %v708
  %v741 = vld [vmem:[%s2] sm:$0xff]
  %v742 = vld [vmem:[%s2 + $0x8] sm:$0xff]
  %v743 = vld [vmem:[%s2 + $0x10] sm:$0xff]
  %v744 = vld [vmem:[%s2 + $0x18] sm:$0xff]
  %v746 = vsel %vm389, %v709, 0
  %v749 = vsel %vm389, %v710, 0
  %v752 = vsel %vm389, %v711, 0
  %v755 = vsel %vm389, %v712, 0
  %v758 = vsel %vm389, %v713, 0
  %v761 = vsel %vm389, %v714, 0
  %v764 = vsel %vm389, %v715, 0
  %v767 = vsel %vm389, %v716, 0
  %v770 = vsel %vm389, %v717, 0
  %v773 = vsel %vm389, %v718, 0
  %v776 = vsel %vm389, %v719, 0
  %v779 = vsel %vm389, %v720, 0
  %v782 = vsel %vm389, %v721, 0
  %v785 = vsel %vm389, %v722, 0
  %v788 = vsel %vm389, %v723, 0
  %v791 = vsel %vm389, %v724, 0
  %v794 = vsel %vm389, %v725, 0
  %v797 = vsel %vm389, %v726, 0
  %v800 = vsel %vm389, %v727, 0
  %v803 = vsel %vm389, %v728, 0
  %v806 = vsel %vm389, %v729, 0
  %v809 = vsel %vm389, %v730, 0
  %v812 = vsel %vm389, %v731, 0
  %v815 = vsel %vm389, %v732, 0
  %v818 = vsel %vm389, %v733, 0
  %v821 = vsel %vm389, %v734, 0
  %v824 = vsel %vm389, %v735, 0
  %v827 = vsel %vm389, %v736, 0
  %v830 = vsel %vm389, %v737, 0
  %v833 = vsel %vm389, %v738, 0
  %v836 = vsel %vm389, %v739, 0
  %v839 = vsel %vm389, %v740, 0
  %841 = vmatprep.subr.mxu0 0.0
  %842 = vmatpush1.msra.mxu0 %v741
  %843 = vmatprep.subr.mxu0 0.0
  %844 = vmatpush1.msra.mxu0 %v742
  %845 = vmatprep.subr.mxu0 0.0
  %846 = vmatpush1.msra.mxu0 %v743
  %847 = vmatprep.subr.mxu0 0.0
  %848 = vmatpush1.msra.mxu0 %v744
  %849 = vmatprep.subr.mxu0 0.0
  %850 = vmatpush1.msra.mxu0 0.0
  %851 = vmatprep.subr.mxu0 0.0
  %852 = vmatpush1.msra.mxu0 0.0
  %853 = vmatprep.subr.mxu0 0.0
  %854 = vmatpush1.msra.mxu0 0.0
  %855 = vmatprep.subr.mxu0 0.0
  %856 = vmatpush1.msra.mxu0 0.0
  %857 = vmatprep.subr.mxu0 0.0
  %858 = vmatpush1.msra.mxu0 0.0
  %859 = vmatprep.subr.mxu0 0.0
  %860 = vmatpush1.msra.mxu0 0.0
  %861 = vmatprep.subr.mxu0 0.0
  %862 = vmatpush1.msra.mxu0 0.0
  %863 = vmatprep.subr.mxu0 0.0
  %864 = vmatpush1.msra.mxu0 0.0
  %865 = vmatprep.subr.mxu0 0.0
  %866 = vmatpush1.msra.mxu0 0.0
  %867 = vmatprep.subr.mxu0 0.0
  %868 = vmatpush1.msra.mxu0 0.0
  %869 = vmatprep.subr.mxu0 0.0
  %870 = vmatpush1.msra.mxu0 0.0
  %871 = vmatprep.subr.mxu0 0.0
  %872 = vmatpush1.msra.mxu0 0.0
  %873 = vmatprep.subr.mxu0 0.0
  %874 = vmatpush1.msra.mxu0 0.0
  %875 = vmatprep.subr.mxu0 0.0
  %876 = vmatpush1.msra.mxu0 0.0
  %877 = vmatprep.subr.mxu0 0.0
  %878 = vmatpush1.msra.mxu0 0.0
  %879 = vmatprep.subr.mxu0 0.0
  %880 = vmatpush1.msra.mxu0 0.0
  %881 = vmatprep.subr.mxu0 0.0
  %882 = vmatpush1.msra.mxu0 0.0
  %883 = vmatprep.subr.mxu0 0.0
  %884 = vmatpush1.msra.mxu0 0.0
  %885 = vmatprep.subr.mxu0 0.0
  %886 = vmatpush1.msra.mxu0 0.0
  %887 = vmatprep.subr.mxu0 0.0
  %888 = vmatpush1.msra.mxu0 0.0
  %889 = vmatprep.subr.mxu0 0.0
  %890 = vmatpush1.msra.mxu0 0.0
  %891 = vmatprep.subr.mxu0 0.0
  %892 = vmatpush1.msra.mxu0 0.0
  %893 = vmatprep.subr.mxu0 0.0
  %894 = vmatpush1.msra.mxu0 0.0
  %895 = vmatprep.subr.mxu0 0.0
  %896 = vmatpush1.msra.mxu0 0.0
  %897 = vmatprep.subr.mxu0 0.0
  %898 = vmatpush1.msra.mxu0 0.0
  %899 = vmatprep.subr.mxu0 0.0
  %900 = vmatpush1.msra.mxu0 0.0
  %901 = vmatprep.subr.mxu0 0.0
  %902 = vmatpush1.msra.mxu0 0.0
  %903 = vmatprep.subr.mxu0 0.0
  %904 = vmatpush1.msra.mxu0 0.0
  %905 = vmatprep.mubr.f32.mxu0 0.0
  %906 = vmatmul.mubr.f32.gmra.mrb[0].mxu0 %v746
  %v907 = vpop.f32.mrb[0].mxu0
  %v908 = vadd.f32 0.0, %v907
  %v909 = vpop.f32.mrb[0].mxu0
  %910 = vmatprep.mubr.f32.mxu0 0.0
  %911 = vmatmul.mubr.f32.gmra.mrb[0].mxu0 %v749
  %v912 = vpop.f32.mrb[0].mxu0
  %v913 = vadd.f32 0.0, %v912
  %v914 = vpop.f32.mrb[0].mxu0
  %915 = vmatprep.mubr.f32.mxu0 0.0
  %916 = vmatmul.mubr.f32.gmra.mrb[0].mxu0 %v752
  %v917 = vpop.f32.mrb[0].mxu0
  %v918 = vadd.f32 0.0, %v917
  %v919 = vpop.f32.mrb[0].mxu0
  %920 = vmatprep.mubr.f32.mxu0 0.0
  %921 = vmatmul.mubr.f32.gmra.mrb[0].mxu0 %v755
  %v922 = vpop.f32.mrb[0].mxu0
  %v923 = vadd.f32 0.0, %v922
  %v924 = vpop.f32.mrb[0].mxu0
  %925 = vmatprep.mubr.f32.mxu0 0.0
  %926 = vmatmul.mubr.f32.gmra.mrb[0].mxu0 %v758
  %v927 = vpop.f32.mrb[0].mxu0
  %v928 = vadd.f32 0.0, %v927
  %v929 = vpop.f32.mrb[0].mxu0
  %930 = vmatprep.mubr.f32.mxu0 0.0
  %931 = vmatmul.mubr.f32.gmra.mrb[0].mxu0 %v761
  %v932 = vpop.f32.mrb[0].mxu0
  %v933 = vadd.f32 0.0, %v932
  %v934 = vpop.f32.mrb[0].mxu0
  %935 = vmatprep.mubr.f32.mxu0 0.0
  %936 = vmatmul.mubr.f32.gmra.mrb[0].mxu0 %v764
  %v937 = vpop.f32.mrb[0].mxu0
  %v938 = vadd.f32 0.0, %v937
  %v939 = vpop.f32.mrb[0].mxu0
  %940 = vmatprep.mubr.f32.mxu0 0.0
  %941 = vmatmul.mubr.f32.gmra.mrb[0].mxu0 %v767
  %v942 = vpop.f32.mrb[0].mxu0
  %v943 = vadd.f32 0.0, %v942
  %v944 = vpop.f32.mrb[0].mxu0
  %945 = vmatprep.mubr.f32.mxu0 0.0
  %946 = vmatmul.mubr.f32.gmra.mrb[0].mxu0 %v770
  %v947 = vpop.f32.mrb[0].mxu0
  %v948 = vadd.f32 0.0, %v947
  %v949 = vpop.f32.mrb[0].mxu0
  %950 = vmatprep.mubr.f32.mxu0 0.0
  %951 = vmatmul.mubr.f32.gmra.mrb[0].mxu0 %v773
  %v952 = vpop.f32.mrb[0].mxu0
  %v953 = vadd.f32 0.0, %v952
  %v954 = vpop.f32.mrb[0].mxu0
  %955 = vmatprep.mubr.f32.mxu0 0.0
  %956 = vmatmul.mubr.f32.gmra.mrb[0].mxu0 %v776
  %v957 = vpop.f32.mrb[0].mxu0
  %v958 = vadd.f32 0.0, %v957
  %v959 = vpop.f32.mrb[0].mxu0
  %960 = vmatprep.mubr.f32.mxu0 0.0
  %961 = vmatmul.mubr.f32.gmra.mrb[0].mxu0 %v779
  %v962 = vpop.f32.mrb[0].mxu0
  %v963 = vadd.f32 0.0, %v962
  %v964 = vpop.f32.mrb[0].mxu0
  %965 = vmatprep.mubr.f32.mxu0 0.0
  %966 = vmatmul.mubr.f32.gmra.mrb[0].mxu0 %v782
  %v967 = vpop.f32.mrb[0].mxu0
  %v968 = vadd.f32 0.0, %v967
  %v969 = vpop.f32.mrb[0].mxu0
  %970 = vmatprep.mubr.f32.mxu0 0.0
  %971 = vmatmul.mubr.f32.gmra.mrb[0].mxu0 %v785
  %v972 = vpop.f32.mrb[0].mxu0
  %v973 = vadd.f32 0.0, %v972
  %v974 = vpop.f32.mrb[0].mxu0
  %975 = vmatprep.mubr.f32.mxu0 0.0
  %976 = vmatmul.mubr.f32.gmra.mrb[0].mxu0 %v788
  %v977 = vpop.f32.mrb[0].mxu0
  %v978 = vadd.f32 0.0, %v977
  %v979 = vpop.f32.mrb[0].mxu0
  %980 = vmatprep.mubr.f32.mxu0 0.0
  %981 = vmatmul.mubr.f32.gmra.mrb[0].mxu0 %v791
  %v982 = vpop.f32.mrb[0].mxu0
  %v983 = vadd.f32 0.0, %v982
  %v984 = vpop.f32.mrb[0].mxu0
  %985 = vmatprep.mubr.f32.mxu0 0.0
  %986 = vmatmul.mubr.f32.gmra.mrb[0].mxu0 %v794
  %v987 = vpop.f32.mrb[0].mxu0
  %v988 = vadd.f32 0.0, %v987
  %v989 = vpop.f32.mrb[0].mxu0
  %990 = vmatprep.mubr.f32.mxu0 0.0
  %991 = vmatmul.mubr.f32.gmra.mrb[0].mxu0 %v797
  %v992 = vpop.f32.mrb[0].mxu0
  %v993 = vadd.f32 0.0, %v992
  %v994 = vpop.f32.mrb[0].mxu0
  %995 = vmatprep.mubr.f32.mxu0 0.0
  %996 = vmatmul.mubr.f32.gmra.mrb[0].mxu0 %v800
  %v997 = vpop.f32.mrb[0].mxu0
  %v998 = vadd.f32 0.0, %v997
  %v999 = vpop.f32.mrb[0].mxu0
  %1000 = vmatprep.mubr.f32.mxu0 0.0
  %1001 = vmatmul.mubr.f32.gmra.mrb[0].mxu0 %v803
  %v1002 = vpop.f32.mrb[0].mxu0
  %v1003 = vadd.f32 0.0, %v1002
  %v1004 = vpop.f32.mrb[0].mxu0
  %1005 = vmatprep.mubr.f32.mxu0 0.0
  %1006 = vmatmul.mubr.f32.gmra.mrb[0].mxu0 %v806
  %v1007 = vpop.f32.mrb[0].mxu0
  %v1008 = vadd.f32 0.0, %v1007
  %v1009 = vpop.f32.mrb[0].mxu0
  %1010 = vmatprep.mubr.f32.mxu0 0.0
  %1011 = vmatmul.mubr.f32.gmra.mrb[0].mxu0 %v809
  %v1012 = vpop.f32.mrb[0].mxu0
  %v1013 = vadd.f32 0.0, %v1012
  %v1014 = vpop.f32.mrb[0].mxu0
  %1015 = vmatprep.mubr.f32.mxu0 0.0
  %1016 = vmatmul.mubr.f32.gmra.mrb[0].mxu0 %v812
  %v1017 = vpop.f32.mrb[0].mxu0
  %v1018 = vadd.f32 0.0, %v1017
  %v1019 = vpop.f32.mrb[0].mxu0
  %1020 = vmatprep.mubr.f32.mxu0 0.0
  %1021 = vmatmul.mubr.f32.gmra.mrb[0].mxu0 %v815
  %v1022 = vpop.f32.mrb[0].mxu0
  %v1023 = vadd.f32 0.0, %v1022
  %v1024 = vpop.f32.mrb[0].mxu0
  %1025 = vmatprep.mubr.f32.mxu0 0.0
  %1026 = vmatmul.mubr.f32.gmra.mrb[0].mxu0 %v818
  %v1027 = vpop.f32.mrb[0].mxu0
  %v1028 = vadd.f32 0.0, %v1027
  %v1029 = vpop.f32.mrb[0].mxu0
  %1030 = vmatprep.mubr.f32.mxu0 0.0
  %1031 = vmatmul.mubr.f32.gmra.mrb[0].mxu0 %v821
  %v1032 = vpop.f32.mrb[0].mxu0
  %v1033 = vadd.f32 0.0, %v1032
  %v1034 = vpop.f32.mrb[0].mxu0
  %1035 = vmatprep.mubr.f32.mxu0 0.0
  %1036 = vmatmul.mubr.f32.gmra.mrb[0].mxu0 %v824
  %v1037 = vpop.f32.mrb[0].mxu0
  %v1038 = vadd.f32 0.0, %v1037
  %v1039 = vpop.f32.mrb[0].mxu0
  %1040 = vmatprep.mubr.f32.mxu0 0.0
  %1041 = vmatmul.mubr.f32.gmra.mrb[0].mxu0 %v827
  %v1042 = vpop.f32.mrb[0].mxu0
  %v1043 = vadd.f32 0.0, %v1042
  %v1044 = vpop.f32.mrb[0].mxu0
  %1045 = vmatprep.mubr.f32.mxu0 0.0
  %1046 = vmatmul.mubr.f32.gmra.mrb[0].mxu0 %v830
  %v1047 = vpop.f32.mrb[0].mxu0
  %v1048 = vadd.f32 0.0, %v1047
  %v1049 = vpop.f32.mrb[0].mxu0
  %1050 = vmatprep.mubr.f32.mxu0 0.0
  %1051 = vmatmul.mubr.f32.gmra.mrb[0].mxu0 %v833
  %v1052 = vpop.f32.mrb[0].mxu0
  %v1053 = vadd.f32 0.0, %v1052
  %v1054 = vpop.f32.mrb[0].mxu0
  %1055 = vmatprep.mubr.f32.mxu0 0.0
  %1056 = vmatmul.mubr.f32.gmra.mrb[0].mxu0 %v836
  %v1057 = vpop.f32.mrb[0].mxu0
  %v1058 = vadd.f32 0.0, %v1057
  %v1059 = vpop.f32.mrb[0].mxu0
  %1060 = vmatprep.mubr.f32.mxu0 0.0
  %1061 = vmatmul.mubr.f32.gmra.mrb[0].mxu0 %v839
  %v1062 = vpop.f32.mrb[0].mxu0
  %v1063 = vadd.f32 0.0, %v1062
  %v1064 = vpop.f32.mrb[0].mxu0
  %1065 = vdwg.mxu0
  %vm1066 = vcmask 523264
  %v1067 = vsel %vm1066, %v908, 0.0
  %v1068 = vsel %vm1066, %v913, 0.0
  %v1069 = vadd.f32 %v1067, %v1068
  %v1070 = vsel %vm1066, %v918, 0.0
  %v1071 = vadd.f32 %v1069, %v1070
  %v1072 = vsel %vm1066, %v923, 0.0
  %v1073 = vadd.f32 %v1071, %v1072
  %v1074 = vsel %vm1066, %v928, 0.0
  %v1075 = vadd.f32 %v1073, %v1074
  %v1076 = vsel %vm1066, %v933, 0.0
  %v1077 = vadd.f32 %v1075, %v1076
  %v1078 = vsel %vm1066, %v938, 0.0
  %v1079 = vadd.f32 %v1077, %v1078
  %v1080 = vsel %vm1066, %v943, 0.0
  %v1081 = vadd.f32 %v1079, %v1080
  %v1082 = vsel %vm1066, %v948, 0.0
  %v1083 = vadd.f32 %v1081, %v1082
  %v1084 = vsel %vm1066, %v953, 0.0
  %v1085 = vadd.f32 %v1083, %v1084
  %v1086 = vsel %vm1066, %v958, 0.0
  %v1087 = vadd.f32 %v1085, %v1086
  %v1088 = vsel %vm1066, %v963, 0.0
  %v1089 = vadd.f32 %v1087, %v1088
  %v1090 = vsel %vm1066, %v968, 0.0
  %v1091 = vadd.f32 %v1089, %v1090
  %v1092 = vsel %vm1066, %v973, 0.0
  %v1093 = vadd.f32 %v1091, %v1092
  %v1094 = vsel %vm1066, %v978, 0.0
  %v1095 = vadd.f32 %v1093, %v1094
  %v1096 = vsel %vm1066, %v983, 0.0
  %v1097 = vadd.f32 %v1095, %v1096
  %v1098 = vsel %vm1066, %v988, 0.0
  %v1099 = vadd.f32 %v1097, %v1098
  %v1100 = vsel %vm1066, %v993, 0.0
  %v1101 = vadd.f32 %v1099, %v1100
  %v1102 = vsel %vm1066, %v998, 0.0
  %v1103 = vadd.f32 %v1101, %v1102
  %v1104 = vsel %vm1066, %v1003, 0.0
  %v1105 = vadd.f32 %v1103, %v1104
  %v1106 = vsel %vm1066, %v1008, 0.0
  %v1107 = vadd.f32 %v1105, %v1106
  %v1108 = vsel %vm1066, %v1013, 0.0
  %v1109 = vadd.f32 %v1107, %v1108
  %v1110 = vsel %vm1066, %v1018, 0.0
  %v1111 = vadd.f32 %v1109, %v1110
  %v1112 = vsel %vm1066, %v1023, 0.0
  %v1113 = vadd.f32 %v1111, %v1112
  %v1114 = vsel %vm1066, %v1028, 0.0
  %v1115 = vadd.f32 %v1113, %v1114
  %v1116 = vsel %vm1066, %v1033, 0.0
  %v1117 = vadd.f32 %v1115, %v1116
  %v1118 = vsel %vm1066, %v1038, 0.0
  %v1119 = vadd.f32 %v1117, %v1118
  %v1120 = vsel %vm1066, %v1043, 0.0
  %v1121 = vadd.f32 %v1119, %v1120
  %v1122 = vsel %vm1066, %v1048, 0.0
  %v1123 = vadd.f32 %v1121, %v1122
  %v1124 = vsel %vm1066, %v1053, 0.0
  %v1125 = vadd.f32 %v1123, %v1124
  %v1126 = vsel %vm1066, %v1058, 0.0
  %v1127 = vadd.f32 %v1125, %v1126
  %v1128 = vsel %vm1066, %v1063, 0.0
  %v1129 = vadd.f32 %v1127, %v1128
  %v1130 = vrot.slane %v1129, 4
  %v1131 = vadd.f32 %v1129, %v1130
  %v1132 = vrot.slane %v1131, 2
  %v1133 = vadd.f32 %v1131, %v1132
  %v1134 = vrot.slane %v1133, 1
  %v1135 = vadd.f32 %v1133, %v1134
  %v1136 = vmul.f32 %v1135, %v459
  %v1137 = vmul.f32 %v908, %v908
  %v1138 = vmul.f32 %v913, %v913
  %v1139 = vmul.f32 %v918, %v918
  %v1140 = vmul.f32 %v923, %v923
  %v1141 = vmul.f32 %v928, %v928
  %v1142 = vmul.f32 %v933, %v933
  %v1143 = vmul.f32 %v938, %v938
  %v1144 = vmul.f32 %v943, %v943
  %v1145 = vmul.f32 %v948, %v948
  %v1146 = vmul.f32 %v953, %v953
  %v1147 = vmul.f32 %v958, %v958
  %v1148 = vmul.f32 %v963, %v963
  %v1149 = vmul.f32 %v968, %v968
  %v1150 = vmul.f32 %v973, %v973
  %v1151 = vmul.f32 %v978, %v978
  %v1152 = vmul.f32 %v983, %v983
  %v1153 = vmul.f32 %v988, %v988
  %v1154 = vmul.f32 %v993, %v993
  %v1155 = vmul.f32 %v998, %v998
  %v1156 = vmul.f32 %v1003, %v1003
  %v1157 = vmul.f32 %v1008, %v1008
  %v1158 = vmul.f32 %v1013, %v1013
  %v1159 = vmul.f32 %v1018, %v1018
  %v1160 = vmul.f32 %v1023, %v1023
  %v1161 = vmul.f32 %v1028, %v1028
  %v1162 = vmul.f32 %v1033, %v1033
  %v1163 = vmul.f32 %v1038, %v1038
  %v1164 = vmul.f32 %v1043, %v1043
  %v1165 = vmul.f32 %v1048, %v1048
  %v1166 = vmul.f32 %v1053, %v1053
  %v1167 = vmul.f32 %v1058, %v1058
  %v1168 = vmul.f32 %v1063, %v1063
  %v1169 = vsel %vm1066, %v1137, 0.0
  %v1170 = vsel %vm1066, %v1138, 0.0
  %v1171 = vadd.f32 %v1169, %v1170
  %v1172 = vsel %vm1066, %v1139, 0.0
  %v1173 = vadd.f32 %v1171, %v1172
  %v1174 = vsel %vm1066, %v1140, 0.0
  %v1175 = vadd.f32 %v1173, %v1174
  %v1176 = vsel %vm1066, %v1141, 0.0
  %v1177 = vadd.f32 %v1175, %v1176
  %v1178 = vsel %vm1066, %v1142, 0.0
  %v1179 = vadd.f32 %v1177, %v1178
  %v1180 = vsel %vm1066, %v1143, 0.0
  %v1181 = vadd.f32 %v1179, %v1180
  %v1182 = vsel %vm1066, %v1144, 0.0
  %v1183 = vadd.f32 %v1181, %v1182
  %v1184 = vsel %vm1066, %v1145, 0.0
  %v1185 = vadd.f32 %v1183, %v1184
  %v1186 = vsel %vm1066, %v1146, 0.0
  %v1187 = vadd.f32 %v1185, %v1186
  %v1188 = vsel %vm1066, %v1147, 0.0
  %v1189 = vadd.f32 %v1187, %v1188
  %v1190 = vsel %vm1066, %v1148, 0.0
  %v1191 = vadd.f32 %v1189, %v1190
  %v1192 = vsel %vm1066, %v1149, 0.0
  %v1193 = vadd.f32 %v1191, %v1192
  %v1194 = vsel %vm1066, %v1150, 0.0
  %v1195 = vadd.f32 %v1193, %v1194
  %v1196 = vsel %vm1066, %v1151, 0.0
  %v1197 = vadd.f32 %v1195, %v1196
  %v1198 = vsel %vm1066, %v1152, 0.0
  %v1199 = vadd.f32 %v1197, %v1198
  %v1200 = vsel %vm1066, %v1153, 0.0
  %v1201 = vadd.f32 %v1199, %v1200
  %v1202 = vsel %vm1066, %v1154, 0.0
  %v1203 = vadd.f32 %v1201, %v1202
  %v1204 = vsel %vm1066, %v1155, 0.0
  %v1205 = vadd.f32 %v1203, %v1204
  %v1206 = vsel %vm1066, %v1156, 0.0
  %v1207 = vadd.f32 %v1205, %v1206
  %v1208 = vsel %vm1066, %v1157, 0.0
  %v1209 = vadd.f32 %v1207, %v1208
  %v1210 = vsel %vm1066, %v1158, 0.0
  %v1211 = vadd.f32 %v1209, %v1210
  %v1212 = vsel %vm1066, %v1159, 0.0
  %v1213 = vadd.f32 %v1211, %v1212
  %v1214 = vsel %vm1066, %v1160, 0.0
  %v1215 = vadd.f32 %v1213, %v1214
  %v1216 = vsel %vm1066, %v1161, 0.0
  %v1217 = vadd.f32 %v1215, %v1216
  %v1218 = vsel %vm1066, %v1162, 0.0
  %v1219 = vadd.f32 %v1217, %v1218
  %v1220 = vsel %vm1066, %v1163, 0.0
  %v1221 = vadd.f32 %v1219, %v1220
  %v1222 = vsel %vm1066, %v1164, 0.0
  %v1223 = vadd.f32 %v1221, %v1222
  %v1224 = vsel %vm1066, %v1165, 0.0
  %v1225 = vadd.f32 %v1223, %v1224
  %v1226 = vsel %vm1066, %v1166, 0.0
  %v1227 = vadd.f32 %v1225, %v1226
  %v1228 = vsel %vm1066, %v1167, 0.0
  %v1229 = vadd.f32 %v1227, %v1228
  %v1230 = vsel %vm1066, %v1168, 0.0
  %v1231 = vadd.f32 %v1229, %v1230
  %v1232 = vrot.slane %v1231, 4
  %v1233 = vadd.f32 %v1231, %v1232
  %v1234 = vrot.slane %v1233, 2
  %v1235 = vadd.f32 %v1233, %v1234
  %v1236 = vrot.slane %v1235, 1
  %v1237 = vadd.f32 %v1235, %v1236
  %v1238 = vmul.f32 %v1237, %v459
  %v1239 = vmul.f32 %v1136, %v1136
  %v1240 = vsub.f32 %v1238, %v1239
  %v1241 = vadd.f32 %v1240, 1e-05
  %v1242 = vrsqrt.pop %v1241
  %v1243 = vmul.f32 %v26, %v1242
  %v1244 = vmul.f32 %v1136, %v1243
  %v1246 = vrot.slane %v1244, 7
  %v1248 = vsub.f32 %v26, %v1246
  %v1249 = vlaneseq
  %v1250 = vshrl.u32 %v1249, 7
  %v1251 = vsub.s32 2, %v1250
  %v1252 = vrot.slane %v1243, %v1251
  %v1253 = vmul.f32 %v908, %v1252
  %v1254 = vmul.f32 %v913, %v1252
  %v1255 = vmul.f32 %v918, %v1252
  %v1256 = vmul.f32 %v923, %v1252
  %v1257 = vmul.f32 %v928, %v1252
  %v1258 = vmul.f32 %v933, %v1252
  %v1259 = vmul.f32 %v938, %v1252
  %v1260 = vmul.f32 %v943, %v1252
  %v1261 = vmul.f32 %v948, %v1252
  %v1262 = vmul.f32 %v953, %v1252
  %v1263 = vmul.f32 %v958, %v1252
  %v1264 = vmul.f32 %v963, %v1252
  %v1265 = vmul.f32 %v968, %v1252
  %v1266 = vmul.f32 %v973, %v1252
  %v1267 = vmul.f32 %v978, %v1252
  %v1268 = vmul.f32 %v983, %v1252
  %v1269 = vmul.f32 %v988, %v1252
  %v1270 = vmul.f32 %v993, %v1252
  %v1271 = vmul.f32 %v998, %v1252
  %v1272 = vmul.f32 %v1003, %v1252
  %v1273 = vmul.f32 %v1008, %v1252
  %v1274 = vmul.f32 %v1013, %v1252
  %v1275 = vmul.f32 %v1018, %v1252
  %v1276 = vmul.f32 %v1023, %v1252
  %v1277 = vmul.f32 %v1028, %v1252
  %v1278 = vmul.f32 %v1033, %v1252
  %v1279 = vmul.f32 %v1038, %v1252
  %v1280 = vmul.f32 %v1043, %v1252
  %v1281 = vmul.f32 %v1048, %v1252
  %v1282 = vmul.f32 %v1053, %v1252
  %v1283 = vmul.f32 %v1058, %v1252
  %v1284 = vmul.f32 %v1063, %v1252
  %v1285 = vlaneseq
  %v1286 = vshrl.u32 %v1285, 7
  %v1287 = vsub.s32 3, %v1286
  %v1288 = vrot.slane %v1248, %v1287
  %v1289 = vadd.f32 %v1253, %v1288
  %v1290 = vadd.f32 %v1254, %v1288
  %v1291 = vadd.f32 %v1255, %v1288
  %v1292 = vadd.f32 %v1256, %v1288
  %v1293 = vadd.f32 %v1257, %v1288
  %v1294 = vadd.f32 %v1258, %v1288
  %v1295 = vadd.f32 %v1259, %v1288
  %v1296 = vadd.f32 %v1260, %v1288
  %v1297 = vadd.f32 %v1261, %v1288
  %v1298 = vadd.f32 %v1262, %v1288
  %v1299 = vadd.f32 %v1263, %v1288
  %v1300 = vadd.f32 %v1264, %v1288
  %v1301 = vadd.f32 %v1265, %v1288
  %v1302 = vadd.f32 %v1266, %v1288
  %v1303 = vadd.f32 %v1267, %v1288
  %v1304 = vadd.f32 %v1268, %v1288
  %v1305 = vadd.f32 %v1269, %v1288
  %v1306 = vadd.f32 %v1270, %v1288
  %v1307 = vadd.f32 %v1271, %v1288
  %v1308 = vadd.f32 %v1272, %v1288
  %v1309 = vadd.f32 %v1273, %v1288
  %v1310 = vadd.f32 %v1274, %v1288
  %v1311 = vadd.f32 %v1275, %v1288
  %v1312 = vadd.f32 %v1276, %v1288
  %v1313 = vadd.f32 %v1277, %v1288
  %v1314 = vadd.f32 %v1278, %v1288
  %v1315 = vadd.f32 %v1279, %v1288
  %v1316 = vadd.f32 %v1280, %v1288
  %v1317 = vadd.f32 %v1281, %v1288
  %v1318 = vadd.f32 %v1282, %v1288
  %v1319 = vadd.f32 %v1283, %v1288
  %v1320 = vadd.f32 %v1284, %v1288
  %vm1321 = vcmp.gt.f32.partialorder %v1289, 0.0
  %vm1322 = vcmp.gt.f32.partialorder %v1290, 0.0
  %vm1323 = vcmp.gt.f32.partialorder %v1291, 0.0
  %vm1324 = vcmp.gt.f32.partialorder %v1292, 0.0
  %vm1325 = vcmp.gt.f32.partialorder %v1293, 0.0
  %vm1326 = vcmp.gt.f32.partialorder %v1294, 0.0
  %vm1327 = vcmp.gt.f32.partialorder %v1295, 0.0
  %vm1328 = vcmp.gt.f32.partialorder %v1296, 0.0
  %vm1329 = vcmp.gt.f32.partialorder %v1297, 0.0
  %vm1330 = vcmp.gt.f32.partialorder %v1298, 0.0
  %vm1331 = vcmp.gt.f32.partialorder %v1299, 0.0
  %vm1332 = vcmp.gt.f32.partialorder %v1300, 0.0
  %vm1333 = vcmp.gt.f32.partialorder %v1301, 0.0
  %vm1334 = vcmp.gt.f32.partialorder %v1302, 0.0
  %vm1335 = vcmp.gt.f32.partialorder %v1303, 0.0
  %vm1336 = vcmp.gt.f32.partialorder %v1304, 0.0
  %vm1337 = vcmp.gt.f32.partialorder %v1305, 0.0
  %vm1338 = vcmp.gt.f32.partialorder %v1306, 0.0
  %vm1339 = vcmp.gt.f32.partialorder %v1307, 0.0
  %vm1340 = vcmp.gt.f32.partialorder %v1308, 0.0
  %vm1341 = vcmp.gt.f32.partialorder %v1309, 0.0
  %vm1342 = vcmp.gt.f32.partialorder %v1310, 0.0
  %vm1343 = vcmp.gt.f32.partialorder %v1311, 0.0
  %vm1344 = vcmp.gt.f32.partialorder %v1312, 0.0
  %vm1345 = vcmp.gt.f32.partialorder %v1313, 0.0
  %vm1346 = vcmp.gt.f32.partialorder %v1314, 0.0
  %vm1347 = vcmp.gt.f32.partialorder %v1315, 0.0
  %vm1348 = vcmp.gt.f32.partialorder %v1316, 0.0
  %vm1349 = vcmp.gt.f32.partialorder %v1317, 0.0
  %vm1350 = vcmp.gt.f32.partialorder %v1318, 0.0
  %vm1351 = vcmp.gt.f32.partialorder %v1319, 0.0
  %vm1352 = vcmp.gt.f32.partialorder %v1320, 0.0
  %v1353 = vmul.f32 %v1289, 0.3
  %v1354 = vmul.f32 %v1290, 0.3
  %v1355 = vmul.f32 %v1291, 0.3
  %v1356 = vmul.f32 %v1292, 0.3
  %v1357 = vmul.f32 %v1293, 0.3
  %v1358 = vmul.f32 %v1294, 0.3
  %v1359 = vmul.f32 %v1295, 0.3
  %v1360 = vmul.f32 %v1296, 0.3
  %v1361 = vmul.f32 %v1297, 0.3
  %v1362 = vmul.f32 %v1298, 0.3
  %v1363 = vmul.f32 %v1299, 0.3
  %v1364 = vmul.f32 %v1300, 0.3
  %v1365 = vmul.f32 %v1301, 0.3
  %v1366 = vmul.f32 %v1302, 0.3
  %v1367 = vmul.f32 %v1303, 0.3
  %v1368 = vmul.f32 %v1304, 0.3
  %v1369 = vmul.f32 %v1305, 0.3
  %v1370 = vmul.f32 %v1306, 0.3
  %v1371 = vmul.f32 %v1307, 0.3
  %v1372 = vmul.f32 %v1308, 0.3
  %v1373 = vmul.f32 %v1309, 0.3
  %v1374 = vmul.f32 %v1310, 0.3
  %v1375 = vmul.f32 %v1311, 0.3
  %v1376 = vmul.f32 %v1312, 0.3
  %v1377 = vmul.f32 %v1313, 0.3
  %v1378 = vmul.f32 %v1314, 0.3
  %v1379 = vmul.f32 %v1315, 0.3
  %v1380 = vmul.f32 %v1316, 0.3
  %v1381 = vmul.f32 %v1317, 0.3
  %v1382 = vmul.f32 %v1318, 0.3
  %v1383 = vmul.f32 %v1319, 0.3
  %v1384 = vmul.f32 %v1320, 0.3
  %v1385 = vsel %vm1321, %v1289, %v1353
  %v1386 = vsel %vm1322, %v1290, %v1354
  %v1387 = vsel %vm1323, %v1291, %v1355
  %v1388 = vsel %vm1324, %v1292, %v1356
  %v1389 = vsel %vm1325, %v1293, %v1357
  %v1390 = vsel %vm1326, %v1294, %v1358
  %v1391 = vsel %vm1327, %v1295, %v1359
  %v1392 = vsel %vm1328, %v1296, %v1360
  %v1393 = vsel %vm1329, %v1297, %v1361
  %v1394 = vsel %vm1330, %v1298, %v1362
  %v1395 = vsel %vm1331, %v1299, %v1363
  %v1396 = vsel %vm1332, %v1300, %v1364
  %v1397 = vsel %vm1333, %v1301, %v1365
  %v1398 = vsel %vm1334, %v1302, %v1366
  %v1399 = vsel %vm1335, %v1303, %v1367
  %v1400 = vsel %vm1336, %v1304, %v1368
  %v1401 = vsel %vm1337, %v1305, %v1369
  %v1402 = vsel %vm1338, %v1306, %v1370
  %v1403 = vsel %vm1339, %v1307, %v1371
  %v1404 = vsel %vm1340, %v1308, %v1372
  %v1405 = vsel %vm1341, %v1309, %v1373
  %v1406 = vsel %vm1342, %v1310, %v1374
  %v1407 = vsel %vm1343, %v1311, %v1375
  %v1408 = vsel %vm1344, %v1312, %v1376
  %v1409 = vsel %vm1345, %v1313, %v1377
  %v1410 = vsel %vm1346, %v1314, %v1378
  %v1411 = vsel %vm1347, %v1315, %v1379
  %v1412 = vsel %vm1348, %v1316, %v1380
  %v1413 = vsel %vm1349, %v1317, %v1381
  %v1414 = vsel %vm1350, %v1318, %v1382
  %v1415 = vsel %vm1351, %v1319, %v1383
  %v1416 = vsel %vm1352, %v1320, %v1384
  %v1417 = vld [vmem:[%s3] sm:$0xff]
  %v1418 = vld [vmem:[%s3 + $0x8] sm:$0xff]
  %v1419 = vld [vmem:[%s3 + $0x10] sm:$0xff]
  %v1420 = vld [vmem:[%s3 + $0x18] sm:$0xff]
  %v1421 = vld [vmem:[%s3 + $0x20] sm:$0xff]
  %v1422 = vld [vmem:[%s3 + $0x28] sm:$0xff]
  %v1423 = vld [vmem:[%s3 + $0x30] sm:$0xff]
  %v1424 = vld [vmem:[%s3 + $0x38] sm:$0xff]
  %v1426 = vsel %vm1066, %v1385, 0
  %v1429 = vsel %vm1066, %v1386, 0
  %v1432 = vsel %vm1066, %v1387, 0
  %v1435 = vsel %vm1066, %v1388, 0
  %v1438 = vsel %vm1066, %v1389, 0
  %v1441 = vsel %vm1066, %v1390, 0
  %v1444 = vsel %vm1066, %v1391, 0
  %v1447 = vsel %vm1066, %v1392, 0
  %v1450 = vsel %vm1066, %v1393, 0
  %v1453 = vsel %vm1066, %v1394, 0
  %v1456 = vsel %vm1066, %v1395, 0
  %v1459 = vsel %vm1066, %v1396, 0
  %v1462 = vsel %vm1066, %v1397, 0
  %v1465 = vsel %vm1066, %v1398, 0
  %v1468 = vsel %vm1066, %v1399, 0
  %v1471 = vsel %vm1066, %v1400, 0
  %v1474 = vsel %vm1066, %v1401, 0
  %v1477 = vsel %vm1066, %v1402, 0
  %v1480 = vsel %vm1066, %v1403, 0
  %v1483 = vsel %vm1066, %v1404, 0
  %v1486 = vsel %vm1066, %v1405, 0
  %v1489 = vsel %vm1066, %v1406, 0
  %v1492 = vsel %vm1066, %v1407, 0
  %v1495 = vsel %vm1066, %v1408, 0
  %v1498 = vsel %vm1066, %v1409, 0
  %v1501 = vsel %vm1066, %v1410, 0
  %v1504 = vsel %vm1066, %v1411, 0
  %v1507 = vsel %vm1066, %v1412, 0
  %v1510 = vsel %vm1066, %v1413, 0
  %v1513 = vsel %vm1066, %v1414, 0
  %v1516 = vsel %vm1066, %v1415, 0
  %v1519 = vsel %vm1066, %v1416, 0
  %1521 = vmatprep.subr.mxu0 0.0
  %1522 = vmatpush1.msra.mxu0 %v1417
  %1523 = vmatprep.subr.mxu0 0.0
  %1524 = vmatpush1.msra.mxu0 %v1418
  %1525 = vmatprep.subr.mxu0 0.0
  %1526 = vmatpush1.msra.mxu0 %v1419
  %1527 = vmatprep.subr.mxu0 0.0
  %1528 = vmatpush1.msra.mxu0 %v1420
  %1529 = vmatprep.subr.mxu0 0.0
  %1530 = vmatpush1.msra.mxu0 %v1421
  %1531 = vmatprep.subr.mxu0 0.0
  %1532 = vmatpush1.msra.mxu0 %v1422
  %1533 = vmatprep.subr.mxu0 0.0
  %1534 = vmatpush1.msra.mxu0 %v1423
  %1535 = vmatprep.subr.mxu0 0.0
  %1536 = vmatpush1.msra.mxu0 %v1424
  %1537 = vmatprep.subr.mxu0 0.0
  %1538 = vmatpush1.msra.mxu0 0.0
  %1539 = vmatprep.subr.mxu0 0.0
  %1540 = vmatpush1.msra.mxu0 0.0
  %1541 = vmatprep.subr.mxu0 0.0
  %1542 = vmatpush1.msra.mxu0 0.0
  %1543 = vmatprep.subr.mxu0 0.0
  %1544 = vmatpush1.msra.mxu0 0.0
  %1545 = vmatprep.subr.mxu0 0.0
  %1546 = vmatpush1.msra.mxu0 0.0
  %1547 = vmatprep.subr.mxu0 0.0
  %1548 = vmatpush1.msra.mxu0 0.0
  %1549 = vmatprep.subr.mxu0 0.0
  %1550 = vmatpush1.msra.mxu0 0.0
  %1551 = vmatprep.subr.mxu0 0.0
  %1552 = vmatpush1.msra.mxu0 0.0
  %1553 = vmatprep.subr.mxu0 0.0
  %1554 = vmatpush1.msra.mxu0 0.0
  %1555 = vmatprep.subr.mxu0 0.0
  %1556 = vmatpush1.msra.mxu0 0.0
  %1557 = vmatprep.subr.mxu0 0.0
  %1558 = vmatpush1.msra.mxu0 0.0
  %1559 = vmatprep.subr.mxu0 0.0
  %1560 = vmatpush1.msra.mxu0 0.0
  %1561 = vmatprep.subr.mxu0 0.0
  %1562 = vmatpush1.msra.mxu0 0.0
  %1563 = vmatprep.subr.mxu0 0.0
  %1564 = vmatpush1.msra.mxu0 0.0
  %1565 = vmatprep.subr.mxu0 0.0
  %1566 = vmatpush1.msra.mxu0 0.0
  %1567 = vmatprep.subr.mxu0 0.0
  %1568 = vmatpush1.msra.mxu0 0.0
  %1569 = vmatprep.subr.mxu0 0.0
  %1570 = vmatpush1.msra.mxu0 0.0
  %1571 = vmatprep.subr.mxu0 0.0
  %1572 = vmatpush1.msra.mxu0 0.0
  %1573 = vmatprep.subr.mxu0 0.0
  %1574 = vmatpush1.msra.mxu0 0.0
  %1575 = vmatprep.subr.mxu0 0.0
  %1576 = vmatpush1.msra.mxu0 0.0
  %1577 = vmatprep.subr.mxu0 0.0
  %1578 = vmatpush1.msra.mxu0 0.0
  %1579 = vmatprep.subr.mxu0 0.0
  %1580 = vmatpush1.msra.mxu0 0.0
  %1581 = vmatprep.subr.mxu0 0.0
  %1582 = vmatpush1.msra.mxu0 0.0
  %1583 = vmatprep.subr.mxu0 0.0
  %1584 = vmatpush1.msra.mxu0 0.0
  %1585 = vmatprep.mubr.f32.mxu0 0.0
  %1586 = vmatmul.mubr.f32.gmra.mrb[0].mxu0 %v1426
  %v1587 = vpop.f32.mrb[0].mxu0
  %v1588 = vadd.f32 0.0, %v1587
  %v1589 = vpop.f32.mrb[0].mxu0
  %1590 = vmatprep.mubr.f32.mxu0 0.0
  %1591 = vmatmul.mubr.f32.gmra.mrb[0].mxu0 %v1429
  %v1592 = vpop.f32.mrb[0].mxu0
  %v1593 = vadd.f32 0.0, %v1592
  %v1594 = vpop.f32.mrb[0].mxu0
  %1595 = vmatprep.mubr.f32.mxu0 0.0
  %1596 = vmatmul.mubr.f32.gmra.mrb[0].mxu0 %v1432
  %v1597 = vpop.f32.mrb[0].mxu0
  %v1598 = vadd.f32 0.0, %v1597
  %v1599 = vpop.f32.mrb[0].mxu0
  %1600 = vmatprep.mubr.f32.mxu0 0.0
  %1601 = vmatmul.mubr.f32.gmra.mrb[0].mxu0 %v1435
  %v1602 = vpop.f32.mrb[0].mxu0
  %v1603 = vadd.f32 0.0, %v1602
  %v1604 = vpop.f32.mrb[0].mxu0
  %1605 = vmatprep.mubr.f32.mxu0 0.0
  %1606 = vmatmul.mubr.f32.gmra.mrb[0].mxu0 %v1438
  %v1607 = vpop.f32.mrb[0].mxu0
  %v1608 = vadd.f32 0.0, %v1607
  %v1609 = vpop.f32.mrb[0].mxu0
  %1610 = vmatprep.mubr.f32.mxu0 0.0
  %1611 = vmatmul.mubr.f32.gmra.mrb[0].mxu0 %v1441
  %v1612 = vpop.f32.mrb[0].mxu0
  %v1613 = vadd.f32 0.0, %v1612
  %v1614 = vpop.f32.mrb[0].mxu0
  %1615 = vmatprep.mubr.f32.mxu0 0.0
  %1616 = vmatmul.mubr.f32.gmra.mrb[0].mxu0 %v1444
  %v1617 = vpop.f32.mrb[0].mxu0
  %v1618 = vadd.f32 0.0, %v1617
  %v1619 = vpop.f32.mrb[0].mxu0
  %1620 = vmatprep.mubr.f32.mxu0 0.0
  %1621 = vmatmul.mubr.f32.gmra.mrb[0].mxu0 %v1447
  %v1622 = vpop.f32.mrb[0].mxu0
  %v1623 = vadd.f32 0.0, %v1622
  %v1624 = vpop.f32.mrb[0].mxu0
  %1625 = vmatprep.mubr.f32.mxu0 0.0
  %1626 = vmatmul.mubr.f32.gmra.mrb[0].mxu0 %v1450
  %v1627 = vpop.f32.mrb[0].mxu0
  %v1628 = vadd.f32 0.0, %v1627
  %v1629 = vpop.f32.mrb[0].mxu0
  %1630 = vmatprep.mubr.f32.mxu0 0.0
  %1631 = vmatmul.mubr.f32.gmra.mrb[0].mxu0 %v1453
  %v1632 = vpop.f32.mrb[0].mxu0
  %v1633 = vadd.f32 0.0, %v1632
  %v1634 = vpop.f32.mrb[0].mxu0
  %1635 = vmatprep.mubr.f32.mxu0 0.0
  %1636 = vmatmul.mubr.f32.gmra.mrb[0].mxu0 %v1456
  %v1637 = vpop.f32.mrb[0].mxu0
  %v1638 = vadd.f32 0.0, %v1637
  %v1639 = vpop.f32.mrb[0].mxu0
  %1640 = vmatprep.mubr.f32.mxu0 0.0
  %1641 = vmatmul.mubr.f32.gmra.mrb[0].mxu0 %v1459
  %v1642 = vpop.f32.mrb[0].mxu0
  %v1643 = vadd.f32 0.0, %v1642
  %v1644 = vpop.f32.mrb[0].mxu0
  %1645 = vmatprep.mubr.f32.mxu0 0.0
  %1646 = vmatmul.mubr.f32.gmra.mrb[0].mxu0 %v1462
  %v1647 = vpop.f32.mrb[0].mxu0
  %v1648 = vadd.f32 0.0, %v1647
  %v1649 = vpop.f32.mrb[0].mxu0
  %1650 = vmatprep.mubr.f32.mxu0 0.0
  %1651 = vmatmul.mubr.f32.gmra.mrb[0].mxu0 %v1465
  %v1652 = vpop.f32.mrb[0].mxu0
  %v1653 = vadd.f32 0.0, %v1652
  %v1654 = vpop.f32.mrb[0].mxu0
  %1655 = vmatprep.mubr.f32.mxu0 0.0
  %1656 = vmatmul.mubr.f32.gmra.mrb[0].mxu0 %v1468
  %v1657 = vpop.f32.mrb[0].mxu0
  %v1658 = vadd.f32 0.0, %v1657
  %v1659 = vpop.f32.mrb[0].mxu0
  %1660 = vmatprep.mubr.f32.mxu0 0.0
  %1661 = vmatmul.mubr.f32.gmra.mrb[0].mxu0 %v1471
  %v1662 = vpop.f32.mrb[0].mxu0
  %v1663 = vadd.f32 0.0, %v1662
  %v1664 = vpop.f32.mrb[0].mxu0
  %1665 = vmatprep.mubr.f32.mxu0 0.0
  %1666 = vmatmul.mubr.f32.gmra.mrb[0].mxu0 %v1474
  %v1667 = vpop.f32.mrb[0].mxu0
  %v1668 = vadd.f32 0.0, %v1667
  %v1669 = vpop.f32.mrb[0].mxu0
  %1670 = vmatprep.mubr.f32.mxu0 0.0
  %1671 = vmatmul.mubr.f32.gmra.mrb[0].mxu0 %v1477
  %v1672 = vpop.f32.mrb[0].mxu0
  %v1673 = vadd.f32 0.0, %v1672
  %v1674 = vpop.f32.mrb[0].mxu0
  %1675 = vmatprep.mubr.f32.mxu0 0.0
  %1676 = vmatmul.mubr.f32.gmra.mrb[0].mxu0 %v1480
  %v1677 = vpop.f32.mrb[0].mxu0
  %v1678 = vadd.f32 0.0, %v1677
  %v1679 = vpop.f32.mrb[0].mxu0
  %1680 = vmatprep.mubr.f32.mxu0 0.0
  %1681 = vmatmul.mubr.f32.gmra.mrb[0].mxu0 %v1483
  %v1682 = vpop.f32.mrb[0].mxu0
  %v1683 = vadd.f32 0.0, %v1682
  %v1684 = vpop.f32.mrb[0].mxu0
  %1685 = vmatprep.mubr.f32.mxu0 0.0
  %1686 = vmatmul.mubr.f32.gmra.mrb[0].mxu0 %v1486
  %v1687 = vpop.f32.mrb[0].mxu0
  %v1688 = vadd.f32 0.0, %v1687
  %v1689 = vpop.f32.mrb[0].mxu0
  %1690 = vmatprep.mubr.f32.mxu0 0.0
  %1691 = vmatmul.mubr.f32.gmra.mrb[0].mxu0 %v1489
  %v1692 = vpop.f32.mrb[0].mxu0
  %v1693 = vadd.f32 0.0, %v1692
  %v1694 = vpop.f32.mrb[0].mxu0
  %1695 = vmatprep.mubr.f32.mxu0 0.0
  %1696 = vmatmul.mubr.f32.gmra.mrb[0].mxu0 %v1492
  %v1697 = vpop.f32.mrb[0].mxu0
  %v1698 = vadd.f32 0.0, %v1697
  %v1699 = vpop.f32.mrb[0].mxu0
  %1700 = vmatprep.mubr.f32.mxu0 0.0
  %1701 = vmatmul.mubr.f32.gmra.mrb[0].mxu0 %v1495
  %v1702 = vpop.f32.mrb[0].mxu0
  %v1703 = vadd.f32 0.0, %v1702
  %v1704 = vpop.f32.mrb[0].mxu0
  %1705 = vmatprep.mubr.f32.mxu0 0.0
  %1706 = vmatmul.mubr.f32.gmra.mrb[0].mxu0 %v1498
  %v1707 = vpop.f32.mrb[0].mxu0
  %v1708 = vadd.f32 0.0, %v1707
  %v1709 = vpop.f32.mrb[0].mxu0
  %1710 = vmatprep.mubr.f32.mxu0 0.0
  %1711 = vmatmul.mubr.f32.gmra.mrb[0].mxu0 %v1501
  %v1712 = vpop.f32.mrb[0].mxu0
  %v1713 = vadd.f32 0.0, %v1712
  %v1714 = vpop.f32.mrb[0].mxu0
  %1715 = vmatprep.mubr.f32.mxu0 0.0
  %1716 = vmatmul.mubr.f32.gmra.mrb[0].mxu0 %v1504
  %v1717 = vpop.f32.mrb[0].mxu0
  %v1718 = vadd.f32 0.0, %v1717
  %v1719 = vpop.f32.mrb[0].mxu0
  %1720 = vmatprep.mubr.f32.mxu0 0.0
  %1721 = vmatmul.mubr.f32.gmra.mrb[0].mxu0 %v1507
  %v1722 = vpop.f32.mrb[0].mxu0
  %v1723 = vadd.f32 0.0, %v1722
  %v1724 = vpop.f32.mrb[0].mxu0
  %1725 = vmatprep.mubr.f32.mxu0 0.0
  %1726 = vmatmul.mubr.f32.gmra.mrb[0].mxu0 %v1510
  %v1727 = vpop.f32.mrb[0].mxu0
  %v1728 = vadd.f32 0.0, %v1727
  %v1729 = vpop.f32.mrb[0].mxu0
  %1730 = vmatprep.mubr.f32.mxu0 0.0
  %1731 = vmatmul.mubr.f32.gmra.mrb[0].mxu0 %v1513
  %v1732 = vpop.f32.mrb[0].mxu0
  %v1733 = vadd.f32 0.0, %v1732
  %v1734 = vpop.f32.mrb[0].mxu0
  %1735 = vmatprep.mubr.f32.mxu0 0.0
  %1736 = vmatmul.mubr.f32.gmra.mrb[0].mxu0 %v1516
  %v1737 = vpop.f32.mrb[0].mxu0
  %v1738 = vadd.f32 0.0, %v1737
  %v1739 = vpop.f32.mrb[0].mxu0
  %1740 = vmatprep.mubr.f32.mxu0 0.0
  %1741 = vmatmul.mubr.f32.gmra.mrb[0].mxu0 %v1519
  %v1742 = vpop.f32.mrb[0].mxu0
  %v1743 = vadd.f32 0.0, %v1742
  %v1744 = vpop.f32.mrb[0].mxu0
  %1745 = vdwg.mxu0
  %v1746 = vsel %vm1066, %v1588, 0.0
  %v1747 = vsel %vm1066, %v1593, 0.0
  %v1748 = vadd.f32 %v1746, %v1747
  %v1749 = vsel %vm1066, %v1598, 0.0
  %v1750 = vadd.f32 %v1748, %v1749
  %v1751 = vsel %vm1066, %v1603, 0.0
  %v1752 = vadd.f32 %v1750, %v1751
  %v1753 = vsel %vm1066, %v1608, 0.0
  %v1754 = vadd.f32 %v1752, %v1753
  %v1755 = vsel %vm1066, %v1613, 0.0
  %v1756 = vadd.f32 %v1754, %v1755
  %v1757 = vsel %vm1066, %v1618, 0.0
  %v1758 = vadd.f32 %v1756, %v1757
  %v1759 = vsel %vm1066, %v1623, 0.0
  %v1760 = vadd.f32 %v1758, %v1759
  %v1761 = vsel %vm1066, %v1628, 0.0
  %v1762 = vadd.f32 %v1760, %v1761
  %v1763 = vsel %vm1066, %v1633, 0.0
  %v1764 = vadd.f32 %v1762, %v1763
  %v1765 = vsel %vm1066, %v1638, 0.0
  %v1766 = vadd.f32 %v1764, %v1765
  %v1767 = vsel %vm1066, %v1643, 0.0
  %v1768 = vadd.f32 %v1766, %v1767
  %v1769 = vsel %vm1066, %v1648, 0.0
  %v1770 = vadd.f32 %v1768, %v1769
  %v1771 = vsel %vm1066, %v1653, 0.0
  %v1772 = vadd.f32 %v1770, %v1771
  %v1773 = vsel %vm1066, %v1658, 0.0
  %v1774 = vadd.f32 %v1772, %v1773
  %v1775 = vsel %vm1066, %v1663, 0.0
  %v1776 = vadd.f32 %v1774, %v1775
  %v1777 = vsel %vm1066, %v1668, 0.0
  %v1778 = vadd.f32 %v1776, %v1777
  %v1779 = vsel %vm1066, %v1673, 0.0
  %v1780 = vadd.f32 %v1778, %v1779
  %v1781 = vsel %vm1066, %v1678, 0.0
  %v1782 = vadd.f32 %v1780, %v1781
  %v1783 = vsel %vm1066, %v1683, 0.0
  %v1784 = vadd.f32 %v1782, %v1783
  %v1785 = vsel %vm1066, %v1688, 0.0
  %v1786 = vadd.f32 %v1784, %v1785
  %v1787 = vsel %vm1066, %v1693, 0.0
  %v1788 = vadd.f32 %v1786, %v1787
  %v1789 = vsel %vm1066, %v1698, 0.0
  %v1790 = vadd.f32 %v1788, %v1789
  %v1791 = vsel %vm1066, %v1703, 0.0
  %v1792 = vadd.f32 %v1790, %v1791
  %v1793 = vsel %vm1066, %v1708, 0.0
  %v1794 = vadd.f32 %v1792, %v1793
  %v1795 = vsel %vm1066, %v1713, 0.0
  %v1796 = vadd.f32 %v1794, %v1795
  %v1797 = vsel %vm1066, %v1718, 0.0
  %v1798 = vadd.f32 %v1796, %v1797
  %v1799 = vsel %vm1066, %v1723, 0.0
  %v1800 = vadd.f32 %v1798, %v1799
  %v1801 = vsel %vm1066, %v1728, 0.0
  %v1802 = vadd.f32 %v1800, %v1801
  %v1803 = vsel %vm1066, %v1733, 0.0
  %v1804 = vadd.f32 %v1802, %v1803
  %v1805 = vsel %vm1066, %v1738, 0.0
  %v1806 = vadd.f32 %v1804, %v1805
  %v1807 = vsel %vm1066, %v1743, 0.0
  %v1808 = vadd.f32 %v1806, %v1807
  %v1809 = vrot.slane %v1808, 4
  %v1810 = vadd.f32 %v1808, %v1809
  %v1811 = vrot.slane %v1810, 2
  %v1812 = vadd.f32 %v1810, %v1811
  %v1813 = vrot.slane %v1812, 1
  %v1814 = vadd.f32 %v1812, %v1813
  %v1815 = vmul.f32 %v1814, %v459
  %v1816 = vmul.f32 %v1588, %v1588
  %v1817 = vmul.f32 %v1593, %v1593
  %v1818 = vmul.f32 %v1598, %v1598
  %v1819 = vmul.f32 %v1603, %v1603
  %v1820 = vmul.f32 %v1608, %v1608
  %v1821 = vmul.f32 %v1613, %v1613
  %v1822 = vmul.f32 %v1618, %v1618
  %v1823 = vmul.f32 %v1623, %v1623
  %v1824 = vmul.f32 %v1628, %v1628
  %v1825 = vmul.f32 %v1633, %v1633
  %v1826 = vmul.f32 %v1638, %v1638
  %v1827 = vmul.f32 %v1643, %v1643
  %v1828 = vmul.f32 %v1648, %v1648
  %v1829 = vmul.f32 %v1653, %v1653
  %v1830 = vmul.f32 %v1658, %v1658
  %v1831 = vmul.f32 %v1663, %v1663
  %v1832 = vmul.f32 %v1668, %v1668
  %v1833 = vmul.f32 %v1673, %v1673
  %v1834 = vmul.f32 %v1678, %v1678
  %v1835 = vmul.f32 %v1683, %v1683
  %v1836 = vmul.f32 %v1688, %v1688
  %v1837 = vmul.f32 %v1693, %v1693
  %v1838 = vmul.f32 %v1698, %v1698
  %v1839 = vmul.f32 %v1703, %v1703
  %v1840 = vmul.f32 %v1708, %v1708
  %v1841 = vmul.f32 %v1713, %v1713
  %v1842 = vmul.f32 %v1718, %v1718
  %v1843 = vmul.f32 %v1723, %v1723
  %v1844 = vmul.f32 %v1728, %v1728
  %v1845 = vmul.f32 %v1733, %v1733
  %v1846 = vmul.f32 %v1738, %v1738
  %v1847 = vmul.f32 %v1743, %v1743
  %v1848 = vsel %vm1066, %v1816, 0.0
  %v1849 = vsel %vm1066, %v1817, 0.0
  %v1850 = vadd.f32 %v1848, %v1849
  %v1851 = vsel %vm1066, %v1818, 0.0
  %v1852 = vadd.f32 %v1850, %v1851
  %v1853 = vsel %vm1066, %v1819, 0.0
  %v1854 = vadd.f32 %v1852, %v1853
  %v1855 = vsel %vm1066, %v1820, 0.0
  %v1856 = vadd.f32 %v1854, %v1855
  %v1857 = vsel %vm1066, %v1821, 0.0
  %v1858 = vadd.f32 %v1856, %v1857
  %v1859 = vsel %vm1066, %v1822, 0.0
  %v1860 = vadd.f32 %v1858, %v1859
  %v1861 = vsel %vm1066, %v1823, 0.0
  %v1862 = vadd.f32 %v1860, %v1861
  %v1863 = vsel %vm1066, %v1824, 0.0
  %v1864 = vadd.f32 %v1862, %v1863
  %v1865 = vsel %vm1066, %v1825, 0.0
  %v1866 = vadd.f32 %v1864, %v1865
  %v1867 = vsel %vm1066, %v1826, 0.0
  %v1868 = vadd.f32 %v1866, %v1867
  %v1869 = vsel %vm1066, %v1827, 0.0
  %v1870 = vadd.f32 %v1868, %v1869
  %v1871 = vsel %vm1066, %v1828, 0.0
  %v1872 = vadd.f32 %v1870, %v1871
  %v1873 = vsel %vm1066, %v1829, 0.0
  %v1874 = vadd.f32 %v1872, %v1873
  %v1875 = vsel %vm1066, %v1830, 0.0
  %v1876 = vadd.f32 %v1874, %v1875
  %v1877 = vsel %vm1066, %v1831, 0.0
  %v1878 = vadd.f32 %v1876, %v1877
  %v1879 = vsel %vm1066, %v1832, 0.0
  %v1880 = vadd.f32 %v1878, %v1879
  %v1881 = vsel %vm1066, %v1833, 0.0
  %v1882 = vadd.f32 %v1880, %v1881
  %v1883 = vsel %vm1066, %v1834, 0.0
  %v1884 = vadd.f32 %v1882, %v1883
  %v1885 = vsel %vm1066, %v1835, 0.0
  %v1886 = vadd.f32 %v1884, %v1885
  %v1887 = vsel %vm1066, %v1836, 0.0
  %v1888 = vadd.f32 %v1886, %v1887
  %v1889 = vsel %vm1066, %v1837, 0.0
  %v1890 = vadd.f32 %v1888, %v1889
  %v1891 = vsel %vm1066, %v1838, 0.0
  %v1892 = vadd.f32 %v1890, %v1891
  %v1893 = vsel %vm1066, %v1839, 0.0
  %v1894 = vadd.f32 %v1892, %v1893
  %v1895 = vsel %vm1066, %v1840, 0.0
  %v1896 = vadd.f32 %v1894, %v1895
  %v1897 = vsel %vm1066, %v1841, 0.0
  %v1898 = vadd.f32 %v1896, %v1897
  %v1899 = vsel %vm1066, %v1842, 0.0
  %v1900 = vadd.f32 %v1898, %v1899
  %v1901 = vsel %vm1066, %v1843, 0.0
  %v1902 = vadd.f32 %v1900, %v1901
  %v1903 = vsel %vm1066, %v1844, 0.0
  %v1904 = vadd.f32 %v1902, %v1903
  %v1905 = vsel %vm1066, %v1845, 0.0
  %v1906 = vadd.f32 %v1904, %v1905
  %v1907 = vsel %vm1066, %v1846, 0.0
  %v1908 = vadd.f32 %v1906, %v1907
  %v1909 = vsel %vm1066, %v1847, 0.0
  %v1910 = vadd.f32 %v1908, %v1909
  %v1911 = vrot.slane %v1910, 4
  %v1912 = vadd.f32 %v1910, %v1911
  %v1913 = vrot.slane %v1912, 2
  %v1914 = vadd.f32 %v1912, %v1913
  %v1915 = vrot.slane %v1914, 1
  %v1916 = vadd.f32 %v1914, %v1915
  %v1917 = vmul.f32 %v1916, %v459
  %v1918 = vmul.f32 %v1815, %v1815
  %v1919 = vsub.f32 %v1917, %v1918
  %v1920 = vadd.f32 %v1919, 1e-05
  %v1921 = vrsqrt.pop %v1920
  %v1922 = vmul.f32 %v26, %v1921
  %v1923 = vmul.f32 %v1815, %v1922
  %v1925 = vrot.slane %v1923, 7
  %v1927 = vsub.f32 %v26, %v1925
  %v1928 = vlaneseq
  %v1929 = vshrl.u32 %v1928, 7
  %v1930 = vsub.s32 4, %v1929
  %v1931 = vrot.slane %v1922, %v1930
  %v1932 = vmul.f32 %v1588, %v1931
  %v1933 = vmul.f32 %v1593, %v1931
  %v1934 = vmul.f32 %v1598, %v1931
  %v1935 = vmul.f32 %v1603, %v1931
  %v1936 = vmul.f32 %v1608, %v1931
  %v1937 = vmul.f32 %v1613, %v1931
  %v1938 = vmul.f32 %v1618, %v1931
  %v1939 = vmul.f32 %v1623, %v1931
  %v1940 = vmul.f32 %v1628, %v1931
  %v1941 = vmul.f32 %v1633, %v1931
  %v1942 = vmul.f32 %v1638, %v1931
  %v1943 = vmul.f32 %v1643, %v1931
  %v1944 = vmul.f32 %v1648, %v1931
  %v1945 = vmul.f32 %v1653, %v1931
  %v1946 = vmul.f32 %v1658, %v1931
  %v1947 = vmul.f32 %v1663, %v1931
  %v1948 = vmul.f32 %v1668, %v1931
  %v1949 = vmul.f32 %v1673, %v1931
  %v1950 = vmul.f32 %v1678, %v1931
  %v1951 = vmul.f32 %v1683, %v1931
  %v1952 = vmul.f32 %v1688, %v1931
  %v1953 = vmul.f32 %v1693, %v1931
  %v1954 = vmul.f32 %v1698, %v1931
  %v1955 = vmul.f32 %v1703, %v1931
  %v1956 = vmul.f32 %v1708, %v1931
  %v1957 = vmul.f32 %v1713, %v1931
  %v1958 = vmul.f32 %v1718, %v1931
  %v1959 = vmul.f32 %v1723, %v1931
  %v1960 = vmul.f32 %v1728, %v1931
  %v1961 = vmul.f32 %v1733, %v1931
  %v1962 = vmul.f32 %v1738, %v1931
  %v1963 = vmul.f32 %v1743, %v1931
  %v1964 = vlaneseq
  %v1965 = vshrl.u32 %v1964, 7
  %v1966 = vsub.s32 5, %v1965
  %v1967 = vrot.slane %v1927, %v1966
  %v1968 = vadd.f32 %v1932, %v1967
  %v1969 = vadd.f32 %v1933, %v1967
  %v1970 = vadd.f32 %v1934, %v1967
  %v1971 = vadd.f32 %v1935, %v1967
  %v1972 = vadd.f32 %v1936, %v1967
  %v1973 = vadd.f32 %v1937, %v1967
  %v1974 = vadd.f32 %v1938, %v1967
  %v1975 = vadd.f32 %v1939, %v1967
  %v1976 = vadd.f32 %v1940, %v1967
  %v1977 = vadd.f32 %v1941, %v1967
  %v1978 = vadd.f32 %v1942, %v1967
  %v1979 = vadd.f32 %v1943, %v1967
  %v1980 = vadd.f32 %v1944, %v1967
  %v1981 = vadd.f32 %v1945, %v1967
  %v1982 = vadd.f32 %v1946, %v1967
  %v1983 = vadd.f32 %v1947, %v1967
  %v1984 = vadd.f32 %v1948, %v1967
  %v1985 = vadd.f32 %v1949, %v1967
  %v1986 = vadd.f32 %v1950, %v1967
  %v1987 = vadd.f32 %v1951, %v1967
  %v1988 = vadd.f32 %v1952, %v1967
  %v1989 = vadd.f32 %v1953, %v1967
  %v1990 = vadd.f32 %v1954, %v1967
  %v1991 = vadd.f32 %v1955, %v1967
  %v1992 = vadd.f32 %v1956, %v1967
  %v1993 = vadd.f32 %v1957, %v1967
  %v1994 = vadd.f32 %v1958, %v1967
  %v1995 = vadd.f32 %v1959, %v1967
  %v1996 = vadd.f32 %v1960, %v1967
  %v1997 = vadd.f32 %v1961, %v1967
  %v1998 = vadd.f32 %v1962, %v1967
  %v1999 = vadd.f32 %v1963, %v1967
  %vm2000 = vcmp.gt.f32.partialorder %v1968, 0.0
  %vm2001 = vcmp.gt.f32.partialorder %v1969, 0.0
  %vm2002 = vcmp.gt.f32.partialorder %v1970, 0.0
  %vm2003 = vcmp.gt.f32.partialorder %v1971, 0.0
  %vm2004 = vcmp.gt.f32.partialorder %v1972, 0.0
  %vm2005 = vcmp.gt.f32.partialorder %v1973, 0.0
  %vm2006 = vcmp.gt.f32.partialorder %v1974, 0.0
  %vm2007 = vcmp.gt.f32.partialorder %v1975, 0.0
  %vm2008 = vcmp.gt.f32.partialorder %v1976, 0.0
  %vm2009 = vcmp.gt.f32.partialorder %v1977, 0.0
  %vm2010 = vcmp.gt.f32.partialorder %v1978, 0.0
  %vm2011 = vcmp.gt.f32.partialorder %v1979, 0.0
  %vm2012 = vcmp.gt.f32.partialorder %v1980, 0.0
  %vm2013 = vcmp.gt.f32.partialorder %v1981, 0.0
  %vm2014 = vcmp.gt.f32.partialorder %v1982, 0.0
  %vm2015 = vcmp.gt.f32.partialorder %v1983, 0.0
  %vm2016 = vcmp.gt.f32.partialorder %v1984, 0.0
  %vm2017 = vcmp.gt.f32.partialorder %v1985, 0.0
  %vm2018 = vcmp.gt.f32.partialorder %v1986, 0.0
  %vm2019 = vcmp.gt.f32.partialorder %v1987, 0.0
  %vm2020 = vcmp.gt.f32.partialorder %v1988, 0.0
  %vm2021 = vcmp.gt.f32.partialorder %v1989, 0.0
  %vm2022 = vcmp.gt.f32.partialorder %v1990, 0.0
  %vm2023 = vcmp.gt.f32.partialorder %v1991, 0.0
  %vm2024 = vcmp.gt.f32.partialorder %v1992, 0.0
  %vm2025 = vcmp.gt.f32.partialorder %v1993, 0.0
  %vm2026 = vcmp.gt.f32.partialorder %v1994, 0.0
  %vm2027 = vcmp.gt.f32.partialorder %v1995, 0.0
  %vm2028 = vcmp.gt.f32.partialorder %v1996, 0.0
  %vm2029 = vcmp.gt.f32.partialorder %v1997, 0.0
  %vm2030 = vcmp.gt.f32.partialorder %v1998, 0.0
  %vm2031 = vcmp.gt.f32.partialorder %v1999, 0.0
  %v2032 = vmul.f32 %v1968, 0.3
  %v2033 = vmul.f32 %v1969, 0.3
  %v2034 = vmul.f32 %v1970, 0.3
  %v2035 = vmul.f32 %v1971, 0.3
  %v2036 = vmul.f32 %v1972, 0.3
  %v2037 = vmul.f32 %v1973, 0.3
  %v2038 = vmul.f32 %v1974, 0.3
  %v2039 = vmul.f32 %v1975, 0.3
  %v2040 = vmul.f32 %v1976, 0.3
  %v2041 = vmul.f32 %v1977, 0.3
  %v2042 = vmul.f32 %v1978, 0.3
  %v2043 = vmul.f32 %v1979, 0.3
  %v2044 = vmul.f32 %v1980, 0.3
  %v2045 = vmul.f32 %v1981, 0.3
  %v2046 = vmul.f32 %v1982, 0.3
  %v2047 = vmul.f32 %v1983, 0.3
  %v2048 = vmul.f32 %v1984, 0.3
  %v2049 = vmul.f32 %v1985, 0.3
  %v2050 = vmul.f32 %v1986, 0.3
  %v2051 = vmul.f32 %v1987, 0.3
  %v2052 = vmul.f32 %v1988, 0.3
  %v2053 = vmul.f32 %v1989, 0.3
  %v2054 = vmul.f32 %v1990, 0.3
  %v2055 = vmul.f32 %v1991, 0.3
  %v2056 = vmul.f32 %v1992, 0.3
  %v2057 = vmul.f32 %v1993, 0.3
  %v2058 = vmul.f32 %v1994, 0.3
  %v2059 = vmul.f32 %v1995, 0.3
  %v2060 = vmul.f32 %v1996, 0.3
  %v2061 = vmul.f32 %v1997, 0.3
  %v2062 = vmul.f32 %v1998, 0.3
  %v2063 = vmul.f32 %v1999, 0.3
  %v2064 = vsel %vm2000, %v1968, %v2032
  %v2065 = vsel %vm2001, %v1969, %v2033
  %v2066 = vsel %vm2002, %v1970, %v2034
  %v2067 = vsel %vm2003, %v1971, %v2035
  %v2068 = vsel %vm2004, %v1972, %v2036
  %v2069 = vsel %vm2005, %v1973, %v2037
  %v2070 = vsel %vm2006, %v1974, %v2038
  %v2071 = vsel %vm2007, %v1975, %v2039
  %v2072 = vsel %vm2008, %v1976, %v2040
  %v2073 = vsel %vm2009, %v1977, %v2041
  %v2074 = vsel %vm2010, %v1978, %v2042
  %v2075 = vsel %vm2011, %v1979, %v2043
  %v2076 = vsel %vm2012, %v1980, %v2044
  %v2077 = vsel %vm2013, %v1981, %v2045
  %v2078 = vsel %vm2014, %v1982, %v2046
  %v2079 = vsel %vm2015, %v1983, %v2047
  %v2080 = vsel %vm2016, %v1984, %v2048
  %v2081 = vsel %vm2017, %v1985, %v2049
  %v2082 = vsel %vm2018, %v1986, %v2050
  %v2083 = vsel %vm2019, %v1987, %v2051
  %v2084 = vsel %vm2020, %v1988, %v2052
  %v2085 = vsel %vm2021, %v1989, %v2053
  %v2086 = vsel %vm2022, %v1990, %v2054
  %v2087 = vsel %vm2023, %v1991, %v2055
  %v2088 = vsel %vm2024, %v1992, %v2056
  %v2089 = vsel %vm2025, %v1993, %v2057
  %v2090 = vsel %vm2026, %v1994, %v2058
  %v2091 = vsel %vm2027, %v1995, %v2059
  %v2092 = vsel %vm2028, %v1996, %v2060
  %v2093 = vsel %vm2029, %v1997, %v2061
  %v2094 = vsel %vm2030, %v1998, %v2062
  %v2095 = vsel %vm2031, %v1999, %v2063
  %v2096 = vld [vmem:[%s4] sm:$0xff]
  %v2097 = vld [vmem:[%s4 + $0x8] sm:$0xff]
  %v2098 = vld [vmem:[%s4 + $0x10] sm:$0xff]
  %v2099 = vld [vmem:[%s4 + $0x18] sm:$0xff]
  %v2100 = vld [vmem:[%s4 + $0x20] sm:$0xff]
  %v2101 = vld [vmem:[%s4 + $0x28] sm:$0xff]
  %v2102 = vld [vmem:[%s4 + $0x30] sm:$0xff]
  %v2103 = vld [vmem:[%s4 + $0x38] sm:$0xff]
  %v2105 = vsel %vm1066, %v2064, 0
  %v2108 = vsel %vm1066, %v2065, 0
  %v2111 = vsel %vm1066, %v2066, 0
  %v2114 = vsel %vm1066, %v2067, 0
  %v2117 = vsel %vm1066, %v2068, 0
  %v2120 = vsel %vm1066, %v2069, 0
  %v2123 = vsel %vm1066, %v2070, 0
  %v2126 = vsel %vm1066, %v2071, 0
  %v2129 = vsel %vm1066, %v2072, 0
  %v2132 = vsel %vm1066, %v2073, 0
  %v2135 = vsel %vm1066, %v2074, 0
  %v2138 = vsel %vm1066, %v2075, 0
  %v2141 = vsel %vm1066, %v2076, 0
  %v2144 = vsel %vm1066, %v2077, 0
  %v2147 = vsel %vm1066, %v2078, 0
  %v2150 = vsel %vm1066, %v2079, 0
  %v2153 = vsel %vm1066, %v2080, 0
  %v2156 = vsel %vm1066, %v2081, 0
  %v2159 = vsel %vm1066, %v2082, 0
  %v2162 = vsel %vm1066, %v2083, 0
  %v2165 = vsel %vm1066, %v2084, 0
  %v2168 = vsel %vm1066, %v2085, 0
  %v2171 = vsel %vm1066, %v2086, 0
  %v2174 = vsel %vm1066, %v2087, 0
  %v2177 = vsel %vm1066, %v2088, 0
  %v2180 = vsel %vm1066, %v2089, 0
  %v2183 = vsel %vm1066, %v2090, 0
  %v2186 = vsel %vm1066, %v2091, 0
  %v2189 = vsel %vm1066, %v2092, 0
  %v2192 = vsel %vm1066, %v2093, 0
  %v2195 = vsel %vm1066, %v2094, 0
  %v2198 = vsel %vm1066, %v2095, 0
  %2200 = vmatprep.subr.mxu0 0.0
  %2201 = vmatpush1.msra.mxu0 %v2096
  %2202 = vmatprep.subr.mxu0 0.0
  %2203 = vmatpush1.msra.mxu0 %v2097
  %2204 = vmatprep.subr.mxu0 0.0
  %2205 = vmatpush1.msra.mxu0 %v2098
  %2206 = vmatprep.subr.mxu0 0.0
  %2207 = vmatpush1.msra.mxu0 %v2099
  %2208 = vmatprep.subr.mxu0 0.0
  %2209 = vmatpush1.msra.mxu0 %v2100
  %2210 = vmatprep.subr.mxu0 0.0
  %2211 = vmatpush1.msra.mxu0 %v2101
  %2212 = vmatprep.subr.mxu0 0.0
  %2213 = vmatpush1.msra.mxu0 %v2102
  %2214 = vmatprep.subr.mxu0 0.0
  %2215 = vmatpush1.msra.mxu0 %v2103
  %2216 = vmatprep.subr.mxu0 0.0
  %2217 = vmatpush1.msra.mxu0 0.0
  %2218 = vmatprep.subr.mxu0 0.0
  %2219 = vmatpush1.msra.mxu0 0.0
  %2220 = vmatprep.subr.mxu0 0.0
  %2221 = vmatpush1.msra.mxu0 0.0
  %2222 = vmatprep.subr.mxu0 0.0
  %2223 = vmatpush1.msra.mxu0 0.0
  %2224 = vmatprep.subr.mxu0 0.0
  %2225 = vmatpush1.msra.mxu0 0.0
  %2226 = vmatprep.subr.mxu0 0.0
  %2227 = vmatpush1.msra.mxu0 0.0
  %2228 = vmatprep.subr.mxu0 0.0
  %2229 = vmatpush1.msra.mxu0 0.0
  %2230 = vmatprep.subr.mxu0 0.0
  %2231 = vmatpush1.msra.mxu0 0.0
  %2232 = vmatprep.subr.mxu0 0.0
  %2233 = vmatpush1.msra.mxu0 0.0
  %2234 = vmatprep.subr.mxu0 0.0
  %2235 = vmatpush1.msra.mxu0 0.0
  %2236 = vmatprep.subr.mxu0 0.0
  %2237 = vmatpush1.msra.mxu0 0.0
  %2238 = vmatprep.subr.mxu0 0.0
  %2239 = vmatpush1.msra.mxu0 0.0
  %2240 = vmatprep.subr.mxu0 0.0
  %2241 = vmatpush1.msra.mxu0 0.0
  %2242 = vmatprep.subr.mxu0 0.0
  %2243 = vmatpush1.msra.mxu0 0.0
  %2244 = vmatprep.subr.mxu0 0.0
  %2245 = vmatpush1.msra.mxu0 0.0
  %2246 = vmatprep.subr.mxu0 0.0
  %2247 = vmatpush1.msra.mxu0 0.0
  %2248 = vmatprep.subr.mxu0 0.0
  %2249 = vmatpush1.msra.mxu0 0.0
  %2250 = vmatprep.subr.mxu0 0.0
  %2251 = vmatpush1.msra.mxu0 0.0
  %2252 = vmatprep.subr.mxu0 0.0
  %2253 = vmatpush1.msra.mxu0 0.0
  %2254 = vmatprep.subr.mxu0 0.0
  %2255 = vmatpush1.msra.mxu0 0.0
  %2256 = vmatprep.subr.mxu0 0.0
  %2257 = vmatpush1.msra.mxu0 0.0
  %2258 = vmatprep.subr.mxu0 0.0
  %2259 = vmatpush1.msra.mxu0 0.0
  %2260 = vmatprep.subr.mxu0 0.0
  %2261 = vmatpush1.msra.mxu0 0.0
  %2262 = vmatprep.subr.mxu0 0.0
  %2263 = vmatpush1.msra.mxu0 0.0
  %2264 = vmatprep.mubr.f32.mxu0 0.0
  %2265 = vmatmul.mubr.f32.gmra.mrb[0].mxu0 %v2105
  %v2266 = vpop.f32.mrb[0].mxu0
  %v2267 = vadd.f32 0.0, %v2266
  %v2268 = vpop.f32.mrb[0].mxu0
  %2269 = vmatprep.mubr.f32.mxu0 0.0
  %2270 = vmatmul.mubr.f32.gmra.mrb[0].mxu0 %v2108
  %v2271 = vpop.f32.mrb[0].mxu0
  %v2272 = vadd.f32 0.0, %v2271
  %v2273 = vpop.f32.mrb[0].mxu0
  %2274 = vmatprep.mubr.f32.mxu0 0.0
  %2275 = vmatmul.mubr.f32.gmra.mrb[0].mxu0 %v2111
  %v2276 = vpop.f32.mrb[0].mxu0
  %v2277 = vadd.f32 0.0, %v2276
  %v2278 = vpop.f32.mrb[0].mxu0
  %2279 = vmatprep.mubr.f32.mxu0 0.0
  %2280 = vmatmul.mubr.f32.gmra.mrb[0].mxu0 %v2114
  %v2281 = vpop.f32.mrb[0].mxu0
  %v2282 = vadd.f32 0.0, %v2281
  %v2283 = vpop.f32.mrb[0].mxu0
  %2284 = vmatprep.mubr.f32.mxu0 0.0
  %2285 = vmatmul.mubr.f32.gmra.mrb[0].mxu0 %v2117
  %v2286 = vpop.f32.mrb[0].mxu0
  %v2287 = vadd.f32 0.0, %v2286
  %v2288 = vpop.f32.mrb[0].mxu0
  %2289 = vmatprep.mubr.f32.mxu0 0.0
  %2290 = vmatmul.mubr.f32.gmra.mrb[0].mxu0 %v2120
  %v2291 = vpop.f32.mrb[0].mxu0
  %v2292 = vadd.f32 0.0, %v2291
  %v2293 = vpop.f32.mrb[0].mxu0
  %2294 = vmatprep.mubr.f32.mxu0 0.0
  %2295 = vmatmul.mubr.f32.gmra.mrb[0].mxu0 %v2123
  %v2296 = vpop.f32.mrb[0].mxu0
  %v2297 = vadd.f32 0.0, %v2296
  %v2298 = vpop.f32.mrb[0].mxu0
  %2299 = vmatprep.mubr.f32.mxu0 0.0
  %2300 = vmatmul.mubr.f32.gmra.mrb[0].mxu0 %v2126
  %v2301 = vpop.f32.mrb[0].mxu0
  %v2302 = vadd.f32 0.0, %v2301
  %v2303 = vpop.f32.mrb[0].mxu0
  %2304 = vmatprep.mubr.f32.mxu0 0.0
  %2305 = vmatmul.mubr.f32.gmra.mrb[0].mxu0 %v2129
  %v2306 = vpop.f32.mrb[0].mxu0
  %v2307 = vadd.f32 0.0, %v2306
  %v2308 = vpop.f32.mrb[0].mxu0
  %2309 = vmatprep.mubr.f32.mxu0 0.0
  %2310 = vmatmul.mubr.f32.gmra.mrb[0].mxu0 %v2132
  %v2311 = vpop.f32.mrb[0].mxu0
  %v2312 = vadd.f32 0.0, %v2311
  %v2313 = vpop.f32.mrb[0].mxu0
  %2314 = vmatprep.mubr.f32.mxu0 0.0
  %2315 = vmatmul.mubr.f32.gmra.mrb[0].mxu0 %v2135
  %v2316 = vpop.f32.mrb[0].mxu0
  %v2317 = vadd.f32 0.0, %v2316
  %v2318 = vpop.f32.mrb[0].mxu0
  %2319 = vmatprep.mubr.f32.mxu0 0.0
  %2320 = vmatmul.mubr.f32.gmra.mrb[0].mxu0 %v2138
  %v2321 = vpop.f32.mrb[0].mxu0
  %v2322 = vadd.f32 0.0, %v2321
  %v2323 = vpop.f32.mrb[0].mxu0
  %2324 = vmatprep.mubr.f32.mxu0 0.0
  %2325 = vmatmul.mubr.f32.gmra.mrb[0].mxu0 %v2141
  %v2326 = vpop.f32.mrb[0].mxu0
  %v2327 = vadd.f32 0.0, %v2326
  %v2328 = vpop.f32.mrb[0].mxu0
  %2329 = vmatprep.mubr.f32.mxu0 0.0
  %2330 = vmatmul.mubr.f32.gmra.mrb[0].mxu0 %v2144
  %v2331 = vpop.f32.mrb[0].mxu0
  %v2332 = vadd.f32 0.0, %v2331
  %v2333 = vpop.f32.mrb[0].mxu0
  %2334 = vmatprep.mubr.f32.mxu0 0.0
  %2335 = vmatmul.mubr.f32.gmra.mrb[0].mxu0 %v2147
  %v2336 = vpop.f32.mrb[0].mxu0
  %v2337 = vadd.f32 0.0, %v2336
  %v2338 = vpop.f32.mrb[0].mxu0
  %2339 = vmatprep.mubr.f32.mxu0 0.0
  %2340 = vmatmul.mubr.f32.gmra.mrb[0].mxu0 %v2150
  %v2341 = vpop.f32.mrb[0].mxu0
  %v2342 = vadd.f32 0.0, %v2341
  %v2343 = vpop.f32.mrb[0].mxu0
  %2344 = vmatprep.mubr.f32.mxu0 0.0
  %2345 = vmatmul.mubr.f32.gmra.mrb[0].mxu0 %v2153
  %v2346 = vpop.f32.mrb[0].mxu0
  %v2347 = vadd.f32 0.0, %v2346
  %v2348 = vpop.f32.mrb[0].mxu0
  %2349 = vmatprep.mubr.f32.mxu0 0.0
  %2350 = vmatmul.mubr.f32.gmra.mrb[0].mxu0 %v2156
  %v2351 = vpop.f32.mrb[0].mxu0
  %v2352 = vadd.f32 0.0, %v2351
  %v2353 = vpop.f32.mrb[0].mxu0
  %2354 = vmatprep.mubr.f32.mxu0 0.0
  %2355 = vmatmul.mubr.f32.gmra.mrb[0].mxu0 %v2159
  %v2356 = vpop.f32.mrb[0].mxu0
  %v2357 = vadd.f32 0.0, %v2356
  %v2358 = vpop.f32.mrb[0].mxu0
  %2359 = vmatprep.mubr.f32.mxu0 0.0
  %2360 = vmatmul.mubr.f32.gmra.mrb[0].mxu0 %v2162
  %v2361 = vpop.f32.mrb[0].mxu0
  %v2362 = vadd.f32 0.0, %v2361
  %v2363 = vpop.f32.mrb[0].mxu0
  %2364 = vmatprep.mubr.f32.mxu0 0.0
  %2365 = vmatmul.mubr.f32.gmra.mrb[0].mxu0 %v2165
  %v2366 = vpop.f32.mrb[0].mxu0
  %v2367 = vadd.f32 0.0, %v2366
  %v2368 = vpop.f32.mrb[0].mxu0
  %2369 = vmatprep.mubr.f32.mxu0 0.0
  %2370 = vmatmul.mubr.f32.gmra.mrb[0].mxu0 %v2168
  %v2371 = vpop.f32.mrb[0].mxu0
  %v2372 = vadd.f32 0.0, %v2371
  %v2373 = vpop.f32.mrb[0].mxu0
  %2374 = vmatprep.mubr.f32.mxu0 0.0
  %2375 = vmatmul.mubr.f32.gmra.mrb[0].mxu0 %v2171
  %v2376 = vpop.f32.mrb[0].mxu0
  %v2377 = vadd.f32 0.0, %v2376
  %v2378 = vpop.f32.mrb[0].mxu0
  %2379 = vmatprep.mubr.f32.mxu0 0.0
  %2380 = vmatmul.mubr.f32.gmra.mrb[0].mxu0 %v2174
  %v2381 = vpop.f32.mrb[0].mxu0
  %v2382 = vadd.f32 0.0, %v2381
  %v2383 = vpop.f32.mrb[0].mxu0
  %2384 = vmatprep.mubr.f32.mxu0 0.0
  %2385 = vmatmul.mubr.f32.gmra.mrb[0].mxu0 %v2177
  %v2386 = vpop.f32.mrb[0].mxu0
  %v2387 = vadd.f32 0.0, %v2386
  %v2388 = vpop.f32.mrb[0].mxu0
  %2389 = vmatprep.mubr.f32.mxu0 0.0
  %2390 = vmatmul.mubr.f32.gmra.mrb[0].mxu0 %v2180
  %v2391 = vpop.f32.mrb[0].mxu0
  %v2392 = vadd.f32 0.0, %v2391
  %v2393 = vpop.f32.mrb[0].mxu0
  %2394 = vmatprep.mubr.f32.mxu0 0.0
  %2395 = vmatmul.mubr.f32.gmra.mrb[0].mxu0 %v2183
  %v2396 = vpop.f32.mrb[0].mxu0
  %v2397 = vadd.f32 0.0, %v2396
  %v2398 = vpop.f32.mrb[0].mxu0
  %2399 = vmatprep.mubr.f32.mxu0 0.0
  %2400 = vmatmul.mubr.f32.gmra.mrb[0].mxu0 %v2186
  %v2401 = vpop.f32.mrb[0].mxu0
  %v2402 = vadd.f32 0.0, %v2401
  %v2403 = vpop.f32.mrb[0].mxu0
  %2404 = vmatprep.mubr.f32.mxu0 0.0
  %2405 = vmatmul.mubr.f32.gmra.mrb[0].mxu0 %v2189
  %v2406 = vpop.f32.mrb[0].mxu0
  %v2407 = vadd.f32 0.0, %v2406
  %v2408 = vpop.f32.mrb[0].mxu0
  %2409 = vmatprep.mubr.f32.mxu0 0.0
  %2410 = vmatmul.mubr.f32.gmra.mrb[0].mxu0 %v2192
  %v2411 = vpop.f32.mrb[0].mxu0
  %v2412 = vadd.f32 0.0, %v2411
  %v2413 = vpop.f32.mrb[0].mxu0
  %2414 = vmatprep.mubr.f32.mxu0 0.0
  %2415 = vmatmul.mubr.f32.gmra.mrb[0].mxu0 %v2195
  %v2416 = vpop.f32.mrb[0].mxu0
  %v2417 = vadd.f32 0.0, %v2416
  %v2418 = vpop.f32.mrb[0].mxu0
  %2419 = vmatprep.mubr.f32.mxu0 0.0
  %2420 = vmatmul.mubr.f32.gmra.mrb[0].mxu0 %v2198
  %v2421 = vpop.f32.mrb[0].mxu0
  %v2422 = vadd.f32 0.0, %v2421
  %v2423 = vpop.f32.mrb[0].mxu0
  %2424 = vdwg.mxu0
  %v2425 = vsel %vm389, %v2267, 0.0
  %v2426 = vsel %vm389, %v2272, 0.0
  %v2427 = vadd.f32 %v2425, %v2426
  %v2428 = vsel %vm389, %v2277, 0.0
  %v2429 = vadd.f32 %v2427, %v2428
  %v2430 = vsel %vm389, %v2282, 0.0
  %v2431 = vadd.f32 %v2429, %v2430
  %v2432 = vsel %vm389, %v2287, 0.0
  %v2433 = vadd.f32 %v2431, %v2432
  %v2434 = vsel %vm389, %v2292, 0.0
  %v2435 = vadd.f32 %v2433, %v2434
  %v2436 = vsel %vm389, %v2297, 0.0
  %v2437 = vadd.f32 %v2435, %v2436
  %v2438 = vsel %vm389, %v2302, 0.0
  %v2439 = vadd.f32 %v2437, %v2438
  %v2440 = vsel %vm389, %v2307, 0.0
  %v2441 = vadd.f32 %v2439, %v2440
  %v2442 = vsel %vm389, %v2312, 0.0
  %v2443 = vadd.f32 %v2441, %v2442
  %v2444 = vsel %vm389, %v2317, 0.0
  %v2445 = vadd.f32 %v2443, %v2444
  %v2446 = vsel %vm389, %v2322, 0.0
  %v2447 = vadd.f32 %v2445, %v2446
  %v2448 = vsel %vm389, %v2327, 0.0
  %v2449 = vadd.f32 %v2447, %v2448
  %v2450 = vsel %vm389, %v2332, 0.0
  %v2451 = vadd.f32 %v2449, %v2450
  %v2452 = vsel %vm389, %v2337, 0.0
  %v2453 = vadd.f32 %v2451, %v2452
  %v2454 = vsel %vm389, %v2342, 0.0
  %v2455 = vadd.f32 %v2453, %v2454
  %v2456 = vsel %vm389, %v2347, 0.0
  %v2457 = vadd.f32 %v2455, %v2456
  %v2458 = vsel %vm389, %v2352, 0.0
  %v2459 = vadd.f32 %v2457, %v2458
  %v2460 = vsel %vm389, %v2357, 0.0
  %v2461 = vadd.f32 %v2459, %v2460
  %v2462 = vsel %vm389, %v2362, 0.0
  %v2463 = vadd.f32 %v2461, %v2462
  %v2464 = vsel %vm389, %v2367, 0.0
  %v2465 = vadd.f32 %v2463, %v2464
  %v2466 = vsel %vm389, %v2372, 0.0
  %v2467 = vadd.f32 %v2465, %v2466
  %v2468 = vsel %vm389, %v2377, 0.0
  %v2469 = vadd.f32 %v2467, %v2468
  %v2470 = vsel %vm389, %v2382, 0.0
  %v2471 = vadd.f32 %v2469, %v2470
  %v2472 = vsel %vm389, %v2387, 0.0
  %v2473 = vadd.f32 %v2471, %v2472
  %v2474 = vsel %vm389, %v2392, 0.0
  %v2475 = vadd.f32 %v2473, %v2474
  %v2476 = vsel %vm389, %v2397, 0.0
  %v2477 = vadd.f32 %v2475, %v2476
  %v2478 = vsel %vm389, %v2402, 0.0
  %v2479 = vadd.f32 %v2477, %v2478
  %v2480 = vsel %vm389, %v2407, 0.0
  %v2481 = vadd.f32 %v2479, %v2480
  %v2482 = vsel %vm389, %v2412, 0.0
  %v2483 = vadd.f32 %v2481, %v2482
  %v2484 = vsel %vm389, %v2417, 0.0
  %v2485 = vadd.f32 %v2483, %v2484
  %v2486 = vsel %vm389, %v2422, 0.0
  %v2487 = vadd.f32 %v2485, %v2486
  %v2488 = vrot.slane %v2487, 4
  %v2489 = vadd.f32 %v2487, %v2488
  %v2490 = vrot.slane %v2489, 2
  %v2491 = vadd.f32 %v2489, %v2490
  %v2492 = vrot.slane %v2491, 1
  %v2493 = vadd.f32 %v2491, %v2492
  %v2494 = vmul.f32 %v2493, %v459
  %v2495 = vmul.f32 %v2267, %v2267
  %v2496 = vmul.f32 %v2272, %v2272
  %v2497 = vmul.f32 %v2277, %v2277
  %v2498 = vmul.f32 %v2282, %v2282
  %v2499 = vmul.f32 %v2287, %v2287
  %v2500 = vmul.f32 %v2292, %v2292
  %v2501 = vmul.f32 %v2297, %v2297
  %v2502 = vmul.f32 %v2302, %v2302
  %v2503 = vmul.f32 %v2307, %v2307
  %v2504 = vmul.f32 %v2312, %v2312
  %v2505 = vmul.f32 %v2317, %v2317
  %v2506 = vmul.f32 %v2322, %v2322
  %v2507 = vmul.f32 %v2327, %v2327
  %v2508 = vmul.f32 %v2332, %v2332
  %v2509 = vmul.f32 %v2337, %v2337
  %v2510 = vmul.f32 %v2342, %v2342
  %v2511 = vmul.f32 %v2347, %v2347
  %v2512 = vmul.f32 %v2352, %v2352
  %v2513 = vmul.f32 %v2357, %v2357
  %v2514 = vmul.f32 %v2362, %v2362
  %v2515 = vmul.f32 %v2367, %v2367
  %v2516 = vmul.f32 %v2372, %v2372
  %v2517 = vmul.f32 %v2377, %v2377
  %v2518 = vmul.f32 %v2382, %v2382
  %v2519 = vmul.f32 %v2387, %v2387
  %v2520 = vmul.f32 %v2392, %v2392
  %v2521 = vmul.f32 %v2397, %v2397
  %v2522 = vmul.f32 %v2402, %v2402
  %v2523 = vmul.f32 %v2407, %v2407
  %v2524 = vmul.f32 %v2412, %v2412
  %v2525 = vmul.f32 %v2417, %v2417
  %v2526 = vmul.f32 %v2422, %v2422
  %v2527 = vsel %vm389, %v2495, 0.0
  %v2528 = vsel %vm389, %v2496, 0.0
  %v2529 = vadd.f32 %v2527, %v2528
  %v2530 = vsel %vm389, %v2497, 0.0
  %v2531 = vadd.f32 %v2529, %v2530
  %v2532 = vsel %vm389, %v2498, 0.0
  %v2533 = vadd.f32 %v2531, %v2532
  %v2534 = vsel %vm389, %v2499, 0.0
  %v2535 = vadd.f32 %v2533, %v2534
  %v2536 = vsel %vm389, %v2500, 0.0
  %v2537 = vadd.f32 %v2535, %v2536
  %v2538 = vsel %vm389, %v2501, 0.0
  %v2539 = vadd.f32 %v2537, %v2538
  %v2540 = vsel %vm389, %v2502, 0.0
  %v2541 = vadd.f32 %v2539, %v2540
  %v2542 = vsel %vm389, %v2503, 0.0
  %v2543 = vadd.f32 %v2541, %v2542
  %v2544 = vsel %vm389, %v2504, 0.0
  %v2545 = vadd.f32 %v2543, %v2544
  %v2546 = vsel %vm389, %v2505, 0.0
  %v2547 = vadd.f32 %v2545, %v2546
  %v2548 = vsel %vm389, %v2506, 0.0
  %v2549 = vadd.f32 %v2547, %v2548
  %v2550 = vsel %vm389, %v2507, 0.0
  %v2551 = vadd.f32 %v2549, %v2550
  %v2552 = vsel %vm389, %v2508, 0.0
  %v2553 = vadd.f32 %v2551, %v2552
  %v2554 = vsel %vm389, %v2509, 0.0
  %v2555 = vadd.f32 %v2553, %v2554
  %v2556 = vsel %vm389, %v2510, 0.0
  %v2557 = vadd.f32 %v2555, %v2556
  %v2558 = vsel %vm389, %v2511, 0.0
  %v2559 = vadd.f32 %v2557, %v2558
  %v2560 = vsel %vm389, %v2512, 0.0
  %v2561 = vadd.f32 %v2559, %v2560
  %v2562 = vsel %vm389, %v2513, 0.0
  %v2563 = vadd.f32 %v2561, %v2562
  %v2564 = vsel %vm389, %v2514, 0.0
  %v2565 = vadd.f32 %v2563, %v2564
  %v2566 = vsel %vm389, %v2515, 0.0
  %v2567 = vadd.f32 %v2565, %v2566
  %v2568 = vsel %vm389, %v2516, 0.0
  %v2569 = vadd.f32 %v2567, %v2568
  %v2570 = vsel %vm389, %v2517, 0.0
  %v2571 = vadd.f32 %v2569, %v2570
  %v2572 = vsel %vm389, %v2518, 0.0
  %v2573 = vadd.f32 %v2571, %v2572
  %v2574 = vsel %vm389, %v2519, 0.0
  %v2575 = vadd.f32 %v2573, %v2574
  %v2576 = vsel %vm389, %v2520, 0.0
  %v2577 = vadd.f32 %v2575, %v2576
  %v2578 = vsel %vm389, %v2521, 0.0
  %v2579 = vadd.f32 %v2577, %v2578
  %v2580 = vsel %vm389, %v2522, 0.0
  %v2581 = vadd.f32 %v2579, %v2580
  %v2582 = vsel %vm389, %v2523, 0.0
  %v2583 = vadd.f32 %v2581, %v2582
  %v2584 = vsel %vm389, %v2524, 0.0
  %v2585 = vadd.f32 %v2583, %v2584
  %v2586 = vsel %vm389, %v2525, 0.0
  %v2587 = vadd.f32 %v2585, %v2586
  %v2588 = vsel %vm389, %v2526, 0.0
  %v2589 = vadd.f32 %v2587, %v2588
  %v2590 = vrot.slane %v2589, 4
  %v2591 = vadd.f32 %v2589, %v2590
  %v2592 = vrot.slane %v2591, 2
  %v2593 = vadd.f32 %v2591, %v2592
  %v2594 = vrot.slane %v2593, 1
  %v2595 = vadd.f32 %v2593, %v2594
  %v2596 = vmul.f32 %v2595, %v459
  %v2597 = vmul.f32 %v2494, %v2494
  %v2598 = vsub.f32 %v2596, %v2597
  %v2599 = vadd.f32 %v2598, 1e-05
  %v2600 = vrsqrt.pop %v2599
  %v2601 = vmul.f32 %v26, %v2600
  %v2602 = vmul.f32 %v2494, %v2601
  %v2604 = vrot.slane %v2602, 7
  %v2606 = vsub.f32 %v26, %v2604
  %v2607 = vlaneseq
  %v2608 = vshrl.u32 %v2607, 7
  %v2609 = vsub.s32 6, %v2608
  %v2610 = vrot.slane %v2601, %v2609
  %v2611 = vmul.f32 %v2267, %v2610
  %v2612 = vmul.f32 %v2272, %v2610
  %v2613 = vmul.f32 %v2277, %v2610
  %v2614 = vmul.f32 %v2282, %v2610
  %v2615 = vmul.f32 %v2287, %v2610
  %v2616 = vmul.f32 %v2292, %v2610
  %v2617 = vmul.f32 %v2297, %v2610
  %v2618 = vmul.f32 %v2302, %v2610
  %v2619 = vmul.f32 %v2307, %v2610
  %v2620 = vmul.f32 %v2312, %v2610
  %v2621 = vmul.f32 %v2317, %v2610
  %v2622 = vmul.f32 %v2322, %v2610
  %v2623 = vmul.f32 %v2327, %v2610
  %v2624 = vmul.f32 %v2332, %v2610
  %v2625 = vmul.f32 %v2337, %v2610
  %v2626 = vmul.f32 %v2342, %v2610
  %v2627 = vmul.f32 %v2347, %v2610
  %v2628 = vmul.f32 %v2352, %v2610
  %v2629 = vmul.f32 %v2357, %v2610
  %v2630 = vmul.f32 %v2362, %v2610
  %v2631 = vmul.f32 %v2367, %v2610
  %v2632 = vmul.f32 %v2372, %v2610
  %v2633 = vmul.f32 %v2377, %v2610
  %v2634 = vmul.f32 %v2382, %v2610
  %v2635 = vmul.f32 %v2387, %v2610
  %v2636 = vmul.f32 %v2392, %v2610
  %v2637 = vmul.f32 %v2397, %v2610
  %v2638 = vmul.f32 %v2402, %v2610
  %v2639 = vmul.f32 %v2407, %v2610
  %v2640 = vmul.f32 %v2412, %v2610
  %v2641 = vmul.f32 %v2417, %v2610
  %v2642 = vmul.f32 %v2422, %v2610
  %v2643 = vlaneseq
  %v2644 = vshrl.u32 %v2643, 7
  %v2645 = vsub.s32 7, %v2644
  %v2646 = vrot.slane %v2606, %v2645
  %v2647 = vadd.f32 %v2611, %v2646
  %v2648 = vadd.f32 %v2612, %v2646
  %v2649 = vadd.f32 %v2613, %v2646
  %v2650 = vadd.f32 %v2614, %v2646
  %v2651 = vadd.f32 %v2615, %v2646
  %v2652 = vadd.f32 %v2616, %v2646
  %v2653 = vadd.f32 %v2617, %v2646
  %v2654 = vadd.f32 %v2618, %v2646
  %v2655 = vadd.f32 %v2619, %v2646
  %v2656 = vadd.f32 %v2620, %v2646
  %v2657 = vadd.f32 %v2621, %v2646
  %v2658 = vadd.f32 %v2622, %v2646
  %v2659 = vadd.f32 %v2623, %v2646
  %v2660 = vadd.f32 %v2624, %v2646
  %v2661 = vadd.f32 %v2625, %v2646
  %v2662 = vadd.f32 %v2626, %v2646
  %v2663 = vadd.f32 %v2627, %v2646
  %v2664 = vadd.f32 %v2628, %v2646
  %v2665 = vadd.f32 %v2629, %v2646
  %v2666 = vadd.f32 %v2630, %v2646
  %v2667 = vadd.f32 %v2631, %v2646
  %v2668 = vadd.f32 %v2632, %v2646
  %v2669 = vadd.f32 %v2633, %v2646
  %v2670 = vadd.f32 %v2634, %v2646
  %v2671 = vadd.f32 %v2635, %v2646
  %v2672 = vadd.f32 %v2636, %v2646
  %v2673 = vadd.f32 %v2637, %v2646
  %v2674 = vadd.f32 %v2638, %v2646
  %v2675 = vadd.f32 %v2639, %v2646
  %v2676 = vadd.f32 %v2640, %v2646
  %v2677 = vadd.f32 %v2641, %v2646
  %v2678 = vadd.f32 %v2642, %v2646
  %vm2679 = vcmp.gt.f32.partialorder %v2647, 0.0
  %vm2680 = vcmp.gt.f32.partialorder %v2648, 0.0
  %vm2681 = vcmp.gt.f32.partialorder %v2649, 0.0
  %vm2682 = vcmp.gt.f32.partialorder %v2650, 0.0
  %vm2683 = vcmp.gt.f32.partialorder %v2651, 0.0
  %vm2684 = vcmp.gt.f32.partialorder %v2652, 0.0
  %vm2685 = vcmp.gt.f32.partialorder %v2653, 0.0
  %vm2686 = vcmp.gt.f32.partialorder %v2654, 0.0
  %vm2687 = vcmp.gt.f32.partialorder %v2655, 0.0
  %vm2688 = vcmp.gt.f32.partialorder %v2656, 0.0
  %vm2689 = vcmp.gt.f32.partialorder %v2657, 0.0
  %vm2690 = vcmp.gt.f32.partialorder %v2658, 0.0
  %vm2691 = vcmp.gt.f32.partialorder %v2659, 0.0
  %vm2692 = vcmp.gt.f32.partialorder %v2660, 0.0
  %vm2693 = vcmp.gt.f32.partialorder %v2661, 0.0
  %vm2694 = vcmp.gt.f32.partialorder %v2662, 0.0
  %vm2695 = vcmp.gt.f32.partialorder %v2663, 0.0
  %vm2696 = vcmp.gt.f32.partialorder %v2664, 0.0
  %vm2697 = vcmp.gt.f32.partialorder %v2665, 0.0
  %vm2698 = vcmp.gt.f32.partialorder %v2666, 0.0
  %vm2699 = vcmp.gt.f32.partialorder %v2667, 0.0
  %vm2700 = vcmp.gt.f32.partialorder %v2668, 0.0
  %vm2701 = vcmp.gt.f32.partialorder %v2669, 0.0
  %vm2702 = vcmp.gt.f32.partialorder %v2670, 0.0
  %vm2703 = vcmp.gt.f32.partialorder %v2671, 0.0
  %vm2704 = vcmp.gt.f32.partialorder %v2672, 0.0
  %vm2705 = vcmp.gt.f32.partialorder %v2673, 0.0
  %vm2706 = vcmp.gt.f32.partialorder %v2674, 0.0
  %vm2707 = vcmp.gt.f32.partialorder %v2675, 0.0
  %vm2708 = vcmp.gt.f32.partialorder %v2676, 0.0
  %vm2709 = vcmp.gt.f32.partialorder %v2677, 0.0
  %vm2710 = vcmp.gt.f32.partialorder %v2678, 0.0
  %v2711 = vmul.f32 %v2647, 0.3
  %v2712 = vmul.f32 %v2648, 0.3
  %v2713 = vmul.f32 %v2649, 0.3
  %v2714 = vmul.f32 %v2650, 0.3
  %v2715 = vmul.f32 %v2651, 0.3
  %v2716 = vmul.f32 %v2652, 0.3
  %v2717 = vmul.f32 %v2653, 0.3
  %v2718 = vmul.f32 %v2654, 0.3
  %v2719 = vmul.f32 %v2655, 0.3
  %v2720 = vmul.f32 %v2656, 0.3
  %v2721 = vmul.f32 %v2657, 0.3
  %v2722 = vmul.f32 %v2658, 0.3
  %v2723 = vmul.f32 %v2659, 0.3
  %v2724 = vmul.f32 %v2660, 0.3
  %v2725 = vmul.f32 %v2661, 0.3
  %v2726 = vmul.f32 %v2662, 0.3
  %v2727 = vmul.f32 %v2663, 0.3
  %v2728 = vmul.f32 %v2664, 0.3
  %v2729 = vmul.f32 %v2665, 0.3
  %v2730 = vmul.f32 %v2666, 0.3
  %v2731 = vmul.f32 %v2667, 0.3
  %v2732 = vmul.f32 %v2668, 0.3
  %v2733 = vmul.f32 %v2669, 0.3
  %v2734 = vmul.f32 %v2670, 0.3
  %v2735 = vmul.f32 %v2671, 0.3
  %v2736 = vmul.f32 %v2672, 0.3
  %v2737 = vmul.f32 %v2673, 0.3
  %v2738 = vmul.f32 %v2674, 0.3
  %v2739 = vmul.f32 %v2675, 0.3
  %v2740 = vmul.f32 %v2676, 0.3
  %v2741 = vmul.f32 %v2677, 0.3
  %v2742 = vmul.f32 %v2678, 0.3
  %v2743 = vsel %vm2679, %v2647, %v2711
  %v2744 = vsel %vm2680, %v2648, %v2712
  %v2745 = vsel %vm2681, %v2649, %v2713
  %v2746 = vsel %vm2682, %v2650, %v2714
  %v2747 = vsel %vm2683, %v2651, %v2715
  %v2748 = vsel %vm2684, %v2652, %v2716
  %v2749 = vsel %vm2685, %v2653, %v2717
  %v2750 = vsel %vm2686, %v2654, %v2718
  %v2751 = vsel %vm2687, %v2655, %v2719
  %v2752 = vsel %vm2688, %v2656, %v2720
  %v2753 = vsel %vm2689, %v2657, %v2721
  %v2754 = vsel %vm2690, %v2658, %v2722
  %v2755 = vsel %vm2691, %v2659, %v2723
  %v2756 = vsel %vm2692, %v2660, %v2724
  %v2757 = vsel %vm2693, %v2661, %v2725
  %v2758 = vsel %vm2694, %v2662, %v2726
  %v2759 = vsel %vm2695, %v2663, %v2727
  %v2760 = vsel %vm2696, %v2664, %v2728
  %v2761 = vsel %vm2697, %v2665, %v2729
  %v2762 = vsel %vm2698, %v2666, %v2730
  %v2763 = vsel %vm2699, %v2667, %v2731
  %v2764 = vsel %vm2700, %v2668, %v2732
  %v2765 = vsel %vm2701, %v2669, %v2733
  %v2766 = vsel %vm2702, %v2670, %v2734
  %v2767 = vsel %vm2703, %v2671, %v2735
  %v2768 = vsel %vm2704, %v2672, %v2736
  %v2769 = vsel %vm2705, %v2673, %v2737
  %v2770 = vsel %vm2706, %v2674, %v2738
  %v2771 = vsel %vm2707, %v2675, %v2739
  %v2772 = vsel %vm2708, %v2676, %v2740
  %v2773 = vsel %vm2709, %v2677, %v2741
  %v2774 = vsel %vm2710, %v2678, %v2742
  %v2775 = vld [vmem:[%s5] sm:$0xff]
  %v2776 = vld [vmem:[%s5 + $0x8] sm:$0xff]
  %v2777 = vld [vmem:[%s5 + $0x10] sm:$0xff]
  %v2778 = vld [vmem:[%s5 + $0x18] sm:$0xff]
  %v2779 = vlaneseq
  %v2780 = vshrl.u32 %v2779, 7
  %v2781 = vsub.s32 0, %v2780
  %v2782 = vrot.slane %v27, %v2781
  %v2784 = vsel %vm389, %v2743, 0
  %v2787 = vsel %vm389, %v2744, 0
  %v2790 = vsel %vm389, %v2745, 0
  %v2793 = vsel %vm389, %v2746, 0
  %v2796 = vsel %vm389, %v2747, 0
  %v2799 = vsel %vm389, %v2748, 0
  %v2802 = vsel %vm389, %v2749, 0
  %v2805 = vsel %vm389, %v2750, 0
  %v2808 = vsel %vm389, %v2751, 0
  %v2811 = vsel %vm389, %v2752, 0
  %v2814 = vsel %vm389, %v2753, 0
  %v2817 = vsel %vm389, %v2754, 0
  %v2820 = vsel %vm389, %v2755, 0
  %v2823 = vsel %vm389, %v2756, 0
  %v2826 = vsel %vm389, %v2757, 0
  %v2829 = vsel %vm389, %v2758, 0
  %v2832 = vsel %vm389, %v2759, 0
  %v2835 = vsel %vm389, %v2760, 0
  %v2838 = vsel %vm389, %v2761, 0
  %v2841 = vsel %vm389, %v2762, 0
  %v2844 = vsel %vm389, %v2763, 0
  %v2847 = vsel %vm389, %v2764, 0
  %v2850 = vsel %vm389, %v2765, 0
  %v2853 = vsel %vm389, %v2766, 0
  %v2856 = vsel %vm389, %v2767, 0
  %v2859 = vsel %vm389, %v2768, 0
  %v2862 = vsel %vm389, %v2769, 0
  %v2865 = vsel %vm389, %v2770, 0
  %v2868 = vsel %vm389, %v2771, 0
  %v2871 = vsel %vm389, %v2772, 0
  %v2874 = vsel %vm389, %v2773, 0
  %v2877 = vsel %vm389, %v2774, 0
  %2879 = vmatprep.subr.mxu0 0.0
  %2880 = vmatpush1.msra.mxu0 %v2775
  %2881 = vmatprep.subr.mxu0 0.0
  %2882 = vmatpush1.msra.mxu0 %v2776
  %2883 = vmatprep.subr.mxu0 0.0
  %2884 = vmatpush1.msra.mxu0 %v2777
  %2885 = vmatprep.subr.mxu0 0.0
  %2886 = vmatpush1.msra.mxu0 %v2778
  %2887 = vmatprep.subr.mxu0 0.0
  %2888 = vmatpush1.msra.mxu0 0.0
  %2889 = vmatprep.subr.mxu0 0.0
  %2890 = vmatpush1.msra.mxu0 0.0
  %2891 = vmatprep.subr.mxu0 0.0
  %2892 = vmatpush1.msra.mxu0 0.0
  %2893 = vmatprep.subr.mxu0 0.0
  %2894 = vmatpush1.msra.mxu0 0.0
  %2895 = vmatprep.subr.mxu0 0.0
  %2896 = vmatpush1.msra.mxu0 0.0
  %2897 = vmatprep.subr.mxu0 0.0
  %2898 = vmatpush1.msra.mxu0 0.0
  %2899 = vmatprep.subr.mxu0 0.0
  %2900 = vmatpush1.msra.mxu0 0.0
  %2901 = vmatprep.subr.mxu0 0.0
  %2902 = vmatpush1.msra.mxu0 0.0
  %2903 = vmatprep.subr.mxu0 0.0
  %2904 = vmatpush1.msra.mxu0 0.0
  %2905 = vmatprep.subr.mxu0 0.0
  %2906 = vmatpush1.msra.mxu0 0.0
  %2907 = vmatprep.subr.mxu0 0.0
  %2908 = vmatpush1.msra.mxu0 0.0
  %2909 = vmatprep.subr.mxu0 0.0
  %2910 = vmatpush1.msra.mxu0 0.0
  %2911 = vmatprep.subr.mxu0 0.0
  %2912 = vmatpush1.msra.mxu0 0.0
  %2913 = vmatprep.subr.mxu0 0.0
  %2914 = vmatpush1.msra.mxu0 0.0
  %2915 = vmatprep.subr.mxu0 0.0
  %2916 = vmatpush1.msra.mxu0 0.0
  %2917 = vmatprep.subr.mxu0 0.0
  %2918 = vmatpush1.msra.mxu0 0.0
  %2919 = vmatprep.subr.mxu0 0.0
  %2920 = vmatpush1.msra.mxu0 0.0
  %2921 = vmatprep.subr.mxu0 0.0
  %2922 = vmatpush1.msra.mxu0 0.0
  %2923 = vmatprep.subr.mxu0 0.0
  %2924 = vmatpush1.msra.mxu0 0.0
  %2925 = vmatprep.subr.mxu0 0.0
  %2926 = vmatpush1.msra.mxu0 0.0
  %2927 = vmatprep.subr.mxu0 0.0
  %2928 = vmatpush1.msra.mxu0 0.0
  %2929 = vmatprep.subr.mxu0 0.0
  %2930 = vmatpush1.msra.mxu0 0.0
  %2931 = vmatprep.subr.mxu0 0.0
  %2932 = vmatpush1.msra.mxu0 0.0
  %2933 = vmatprep.subr.mxu0 0.0
  %2934 = vmatpush1.msra.mxu0 0.0
  %2935 = vmatprep.subr.mxu0 0.0
  %2936 = vmatpush1.msra.mxu0 0.0
  %2937 = vmatprep.subr.mxu0 0.0
  %2938 = vmatpush1.msra.mxu0 0.0
  %2939 = vmatprep.subr.mxu0 0.0
  %2940 = vmatpush1.msra.mxu0 0.0
  %2941 = vmatprep.subr.mxu0 0.0
  %2942 = vmatpush1.msra.mxu0 0.0
  %2943 = vmatprep.mubr.f32.mxu0 0.0
  %2944 = vmatmul.mubr.f32.gmra.mrb[0].mxu0 %v2784
  %v2945 = vpop.f32.mrb[0].mxu0
  %v2946 = vadd.f32 %v2782, %v2945
  %v2947 = vpop.f32.mrb[0].mxu0
  %2948 = vmatprep.mubr.f32.mxu0 0.0
  %2949 = vmatmul.mubr.f32.gmra.mrb[0].mxu0 %v2787
  %v2950 = vpop.f32.mrb[0].mxu0
  %v2951 = vadd.f32 %v2782, %v2950
  %v2952 = vpop.f32.mrb[0].mxu0
  %2953 = vmatprep.mubr.f32.mxu0 0.0
  %2954 = vmatmul.mubr.f32.gmra.mrb[0].mxu0 %v2790
  %v2955 = vpop.f32.mrb[0].mxu0
  %v2956 = vadd.f32 %v2782, %v2955
  %v2957 = vpop.f32.mrb[0].mxu0
  %2958 = vmatprep.mubr.f32.mxu0 0.0
  %2959 = vmatmul.mubr.f32.gmra.mrb[0].mxu0 %v2793
  %v2960 = vpop.f32.mrb[0].mxu0
  %v2961 = vadd.f32 %v2782, %v2960
  %v2962 = vpop.f32.mrb[0].mxu0
  %2963 = vmatprep.mubr.f32.mxu0 0.0
  %2964 = vmatmul.mubr.f32.gmra.mrb[0].mxu0 %v2796
  %v2965 = vpop.f32.mrb[0].mxu0
  %v2966 = vadd.f32 %v2782, %v2965
  %v2967 = vpop.f32.mrb[0].mxu0
  %2968 = vmatprep.mubr.f32.mxu0 0.0
  %2969 = vmatmul.mubr.f32.gmra.mrb[0].mxu0 %v2799
  %v2970 = vpop.f32.mrb[0].mxu0
  %v2971 = vadd.f32 %v2782, %v2970
  %v2972 = vpop.f32.mrb[0].mxu0
  %2973 = vmatprep.mubr.f32.mxu0 0.0
  %2974 = vmatmul.mubr.f32.gmra.mrb[0].mxu0 %v2802
  %v2975 = vpop.f32.mrb[0].mxu0
  %v2976 = vadd.f32 %v2782, %v2975
  %v2977 = vpop.f32.mrb[0].mxu0
  %2978 = vmatprep.mubr.f32.mxu0 0.0
  %2979 = vmatmul.mubr.f32.gmra.mrb[0].mxu0 %v2805
  %v2980 = vpop.f32.mrb[0].mxu0
  %v2981 = vadd.f32 %v2782, %v2980
  %v2982 = vpop.f32.mrb[0].mxu0
  %2983 = vmatprep.mubr.f32.mxu0 0.0
  %2984 = vmatmul.mubr.f32.gmra.mrb[0].mxu0 %v2808
  %v2985 = vpop.f32.mrb[0].mxu0
  %v2986 = vadd.f32 %v2782, %v2985
  %v2987 = vpop.f32.mrb[0].mxu0
  %2988 = vmatprep.mubr.f32.mxu0 0.0
  %2989 = vmatmul.mubr.f32.gmra.mrb[0].mxu0 %v2811
  %v2990 = vpop.f32.mrb[0].mxu0
  %v2991 = vadd.f32 %v2782, %v2990
  %v2992 = vpop.f32.mrb[0].mxu0
  %2993 = vmatprep.mubr.f32.mxu0 0.0
  %2994 = vmatmul.mubr.f32.gmra.mrb[0].mxu0 %v2814
  %v2995 = vpop.f32.mrb[0].mxu0
  %v2996 = vadd.f32 %v2782, %v2995
  %v2997 = vpop.f32.mrb[0].mxu0
  %2998 = vmatprep.mubr.f32.mxu0 0.0
  %2999 = vmatmul.mubr.f32.gmra.mrb[0].mxu0 %v2817
  %v3000 = vpop.f32.mrb[0].mxu0
  %v3001 = vadd.f32 %v2782, %v3000
  %v3002 = vpop.f32.mrb[0].mxu0
  %3003 = vmatprep.mubr.f32.mxu0 0.0
  %3004 = vmatmul.mubr.f32.gmra.mrb[0].mxu0 %v2820
  %v3005 = vpop.f32.mrb[0].mxu0
  %v3006 = vadd.f32 %v2782, %v3005
  %v3007 = vpop.f32.mrb[0].mxu0
  %3008 = vmatprep.mubr.f32.mxu0 0.0
  %3009 = vmatmul.mubr.f32.gmra.mrb[0].mxu0 %v2823
  %v3010 = vpop.f32.mrb[0].mxu0
  %v3011 = vadd.f32 %v2782, %v3010
  %v3012 = vpop.f32.mrb[0].mxu0
  %3013 = vmatprep.mubr.f32.mxu0 0.0
  %3014 = vmatmul.mubr.f32.gmra.mrb[0].mxu0 %v2826
  %v3015 = vpop.f32.mrb[0].mxu0
  %v3016 = vadd.f32 %v2782, %v3015
  %v3017 = vpop.f32.mrb[0].mxu0
  %3018 = vmatprep.mubr.f32.mxu0 0.0
  %3019 = vmatmul.mubr.f32.gmra.mrb[0].mxu0 %v2829
  %v3020 = vpop.f32.mrb[0].mxu0
  %v3021 = vadd.f32 %v2782, %v3020
  %v3022 = vpop.f32.mrb[0].mxu0
  %3023 = vmatprep.mubr.f32.mxu0 0.0
  %3024 = vmatmul.mubr.f32.gmra.mrb[0].mxu0 %v2832
  %v3025 = vpop.f32.mrb[0].mxu0
  %v3026 = vadd.f32 %v2782, %v3025
  %v3027 = vpop.f32.mrb[0].mxu0
  %3028 = vmatprep.mubr.f32.mxu0 0.0
  %3029 = vmatmul.mubr.f32.gmra.mrb[0].mxu0 %v2835
  %v3030 = vpop.f32.mrb[0].mxu0
  %v3031 = vadd.f32 %v2782, %v3030
  %v3032 = vpop.f32.mrb[0].mxu0
  %3033 = vmatprep.mubr.f32.mxu0 0.0
  %3034 = vmatmul.mubr.f32.gmra.mrb[0].mxu0 %v2838
  %v3035 = vpop.f32.mrb[0].mxu0
  %v3036 = vadd.f32 %v2782, %v3035
  %v3037 = vpop.f32.mrb[0].mxu0
  %3038 = vmatprep.mubr.f32.mxu0 0.0
  %3039 = vmatmul.mubr.f32.gmra.mrb[0].mxu0 %v2841
  %v3040 = vpop.f32.mrb[0].mxu0
  %v3041 = vadd.f32 %v2782, %v3040
  %v3042 = vpop.f32.mrb[0].mxu0
  %3043 = vmatprep.mubr.f32.mxu0 0.0
  %3044 = vmatmul.mubr.f32.gmra.mrb[0].mxu0 %v2844
  %v3045 = vpop.f32.mrb[0].mxu0
  %v3046 = vadd.f32 %v2782, %v3045
  %v3047 = vpop.f32.mrb[0].mxu0
  %3048 = vmatprep.mubr.f32.mxu0 0.0
  %3049 = vmatmul.mubr.f32.gmra.mrb[0].mxu0 %v2847
  %v3050 = vpop.f32.mrb[0].mxu0
  %v3051 = vadd.f32 %v2782, %v3050
  %v3052 = vpop.f32.mrb[0].mxu0
  %3053 = vmatprep.mubr.f32.mxu0 0.0
  %3054 = vmatmul.mubr.f32.gmra.mrb[0].mxu0 %v2850
  %v3055 = vpop.f32.mrb[0].mxu0
  %v3056 = vadd.f32 %v2782, %v3055
  %v3057 = vpop.f32.mrb[0].mxu0
  %3058 = vmatprep.mubr.f32.mxu0 0.0
  %3059 = vmatmul.mubr.f32.gmra.mrb[0].mxu0 %v2853
  %v3060 = vpop.f32.mrb[0].mxu0
  %v3061 = vadd.f32 %v2782, %v3060
  %v3062 = vpop.f32.mrb[0].mxu0
  %3063 = vmatprep.mubr.f32.mxu0 0.0
  %3064 = vmatmul.mubr.f32.gmra.mrb[0].mxu0 %v2856
  %v3065 = vpop.f32.mrb[0].mxu0
  %v3066 = vadd.f32 %v2782, %v3065
  %v3067 = vpop.f32.mrb[0].mxu0
  %3068 = vmatprep.mubr.f32.mxu0 0.0
  %3069 = vmatmul.mubr.f32.gmra.mrb[0].mxu0 %v2859
  %v3070 = vpop.f32.mrb[0].mxu0
  %v3071 = vadd.f32 %v2782, %v3070
  %v3072 = vpop.f32.mrb[0].mxu0
  %3073 = vmatprep.mubr.f32.mxu0 0.0
  %3074 = vmatmul.mubr.f32.gmra.mrb[0].mxu0 %v2862
  %v3075 = vpop.f32.mrb[0].mxu0
  %v3076 = vadd.f32 %v2782, %v3075
  %v3077 = vpop.f32.mrb[0].mxu0
  %3078 = vmatprep.mubr.f32.mxu0 0.0
  %3079 = vmatmul.mubr.f32.gmra.mrb[0].mxu0 %v2865
  %v3080 = vpop.f32.mrb[0].mxu0
  %v3081 = vadd.f32 %v2782, %v3080
  %v3082 = vpop.f32.mrb[0].mxu0
  %3083 = vmatprep.mubr.f32.mxu0 0.0
  %3084 = vmatmul.mubr.f32.gmra.mrb[0].mxu0 %v2868
  %v3085 = vpop.f32.mrb[0].mxu0
  %v3086 = vadd.f32 %v2782, %v3085
  %v3087 = vpop.f32.mrb[0].mxu0
  %3088 = vmatprep.mubr.f32.mxu0 0.0
  %3089 = vmatmul.mubr.f32.gmra.mrb[0].mxu0 %v2871
  %v3090 = vpop.f32.mrb[0].mxu0
  %v3091 = vadd.f32 %v2782, %v3090
  %v3092 = vpop.f32.mrb[0].mxu0
  %3093 = vmatprep.mubr.f32.mxu0 0.0
  %3094 = vmatmul.mubr.f32.gmra.mrb[0].mxu0 %v2874
  %v3095 = vpop.f32.mrb[0].mxu0
  %v3096 = vadd.f32 %v2782, %v3095
  %v3097 = vpop.f32.mrb[0].mxu0
  %3098 = vmatprep.mubr.f32.mxu0 0.0
  %3099 = vmatmul.mubr.f32.gmra.mrb[0].mxu0 %v2877
  %v3100 = vpop.f32.mrb[0].mxu0
  %v3101 = vadd.f32 %v2782, %v3100
  %v3102 = vpop.f32.mrb[0].mxu0
  %3103 = vdwg.mxu0
  %v3104 = vtanh.pop %v2946
  %v3105 = vtanh.pop %v2951
  %v3106 = vtanh.pop %v2956
  %v3107 = vtanh.pop %v2961
  %v3108 = vtanh.pop %v2966
  %v3109 = vtanh.pop %v2971
  %v3110 = vtanh.pop %v2976
  %v3111 = vtanh.pop %v2981
  %v3112 = vtanh.pop %v2986
  %v3113 = vtanh.pop %v2991
  %v3114 = vtanh.pop %v2996
  %v3115 = vtanh.pop %v3001
  %v3116 = vtanh.pop %v3006
  %v3117 = vtanh.pop %v3011
  %v3118 = vtanh.pop %v3016
  %v3119 = vtanh.pop %v3021
  %v3120 = vtanh.pop %v3026
  %v3121 = vtanh.pop %v3031
  %v3122 = vtanh.pop %v3036
  %v3123 = vtanh.pop %v3041
  %v3124 = vtanh.pop %v3046
  %v3125 = vtanh.pop %v3051
  %v3126 = vtanh.pop %v3056
  %v3127 = vtanh.pop %v3061
  %v3128 = vtanh.pop %v3066
  %v3129 = vtanh.pop %v3071
  %v3130 = vtanh.pop %v3076
  %v3131 = vtanh.pop %v3081
  %v3132 = vtanh.pop %v3086
  %v3133 = vtanh.pop %v3091
  %v3134 = vtanh.pop %v3096
  %v3135 = vtanh.pop %v3101
  %vm3136 = vcmask 195584
  %3137 = vst.msk [vmem:[%s7] sm:$0xff] %vm3136, %v3104
  %3138 = vst.msk [vmem:[%s7 + $0x8] sm:$0xff] %vm3136, %v3105
  %3139 = vst.msk [vmem:[%s7 + $0x10] sm:$0xff] %vm3136, %v3106
  %3140 = vst.msk [vmem:[%s7 + $0x18] sm:$0xff] %vm3136, %v3107
  %3141 = vst.msk [vmem:[%s7 + $0x20] sm:$0xff] %vm3136, %v3108
  %3142 = vst.msk [vmem:[%s7 + $0x28] sm:$0xff] %vm3136, %v3109
  %3143 = vst.msk [vmem:[%s7 + $0x30] sm:$0xff] %vm3136, %v3110
  %3144 = vst.msk [vmem:[%s7 + $0x38] sm:$0xff] %vm3136, %v3111
  %3145 = vst.msk [vmem:[%s7 + $0x40] sm:$0xff] %vm3136, %v3112
  %3146 = vst.msk [vmem:[%s7 + $0x48] sm:$0xff] %vm3136, %v3113
  %3147 = vst.msk [vmem:[%s7 + $0x50] sm:$0xff] %vm3136, %v3114
  %3148 = vst.msk [vmem:[%s7 + $0x58] sm:$0xff] %vm3136, %v3115
  %3149 = vst.msk [vmem:[%s7 + $0x60] sm:$0xff] %vm3136, %v3116
  %3150 = vst.msk [vmem:[%s7 + $0x68] sm:$0xff] %vm3136, %v3117
  %3151 = vst.msk [vmem:[%s7 + $0x70] sm:$0xff] %vm3136, %v3118
  %3152 = vst.msk [vmem:[%s7 + $0x78] sm:$0xff] %vm3136, %v3119
  %3153 = vst.msk [vmem:[%s7 + $0x80] sm:$0xff] %vm3136, %v3120
  %3154 = vst.msk [vmem:[%s7 + $0x88] sm:$0xff] %vm3136, %v3121
  %3155 = vst.msk [vmem:[%s7 + $0x90] sm:$0xff] %vm3136, %v3122
  %3156 = vst.msk [vmem:[%s7 + $0x98] sm:$0xff] %vm3136, %v3123
  %3157 = vst.msk [vmem:[%s7 + $0xa0] sm:$0xff] %vm3136, %v3124
  %3158 = vst.msk [vmem:[%s7 + $0xa8] sm:$0xff] %vm3136, %v3125
  %3159 = vst.msk [vmem:[%s7 + $0xb0] sm:$0xff] %vm3136, %v3126
  %3160 = vst.msk [vmem:[%s7 + $0xb8] sm:$0xff] %vm3136, %v3127
  %3161 = vst.msk [vmem:[%s7 + $0xc0] sm:$0xff] %vm3136, %v3128
  %3162 = vst.msk [vmem:[%s7 + $0xc8] sm:$0xff] %vm3136, %v3129
  %3163 = vst.msk [vmem:[%s7 + $0xd0] sm:$0xff] %vm3136, %v3130
  %3164 = vst.msk [vmem:[%s7 + $0xd8] sm:$0xff] %vm3136, %v3131
  %3165 = vst.msk [vmem:[%s7 + $0xe0] sm:$0xff] %vm3136, %v3132
  %3166 = vst.msk [vmem:[%s7 + $0xe8] sm:$0xff] %vm3136, %v3133
  %3167 = vst.msk [vmem:[%s7 + $0xf0] sm:$0xff] %vm3136, %v3134
  %3168 = vst.msk [vmem:[%s7 + $0xf8] sm:$0xff] %vm3136, %v3135
  // Predicated region
  $region30: #{tpu_custom_call.1} parent=0 // pred_check
    _
  $region31: #{tpu_custom_call.1} parent=0 // pred_check_branch
    %3170 = sbr.rel (0) target = $region33
  $region32: #{tpu_custom_call.1} parent=0 // pred_region
    _
  $region33: #{tpu_custom_call.1} parent=0 // pred_fallthru
    _
  // Predicated region
  $region34: #{tpu_custom_call.1} parent=0 // pred_check
    _
  $region35: #{tpu_custom_call.1} parent=0 // pred_check_branch
    %3172 = sbr.rel (0) target = $region37
  $region36: #{tpu_custom_call.1} parent=0 // pred_region
    _
  $region37: #{tpu_custom_call.1} parent=0 // pred_fallthru
    _

</llo_original>
